<compile_context>
chip_gen: v7x
topology: tpu7x:2x2x1
jax: 0.10.0
libtpu: 0.0.40
codegen_flags: <defaults>
</compile_context>

<pallas_src>
import functools

import jax
import jax.numpy as jnp
from jax.experimental import pallas as pl
from jax.experimental.pallas import tpu as pltpu

HIDDEN = 512
LANE = 128
# ~0.35 us fixed per grid step expressed in "row equivalents" of MXU/DMA work.
_STEP_OVERHEAD_ROWS = 224


def _round_up(x, m):
    return (x + m - 1) // m * m


def _choose_batch_tiling(b):
    """Pick (tb, b_pad): tb a multiple of 16 (bf16 sublane packing), <= 512.

    Minimizes  padded_rows + 224 * grid_steps  (per-row work vs the fixed
    per-step overhead) while requiring >= 2 grid steps when possible so the
    batch axis can be split across v7x's two TensorCores.
    """
    b16 = _round_up(b, 16)
    if b16 <= 32:
        return b16, b16                         # too small to split usefully
    best = None
    for tb in range(16, min(512, b16) + 1, 16):
        padded = _round_up(b16, tb)
        steps = padded // tb
        if steps < 2:
            continue
        score = padded + _STEP_OVERHEAD_ROWS * steps
        if best is None or score < best[0]:
            best = (score, tb, padded)
    _, tb, padded = best
    return tb, padded


# ----------------------------- Pallas kernel --------------------------------

def disc_mlp_kernel(ximg_ref, tlab_ref, w1_ref, w2_ref, w3_ref, w4_ref,
                    b_ref, o_ref):
    """(Linear -> LeakyReLU) x3 -> Linear(512 -> 1) fused MLP.

    ximg_ref : (tb, d_img_pad) bf16  flattened image pixels (lane padded)
    tlab_ref : (tb, 512)       f32   precomputed emb[label] @ W1_label + b1
    w1_ref   : (d_img_pad,512) bf16  image half of layer-1 weights
    w2_ref   : (512, 512)      bf16
    w3_ref   : (512, 512)      bf16
    w4_ref   : (512, 128)      bf16  layer-4 weights in column 0, rest zero
    b_ref    : (4, 512)        f32   row0=b2, row1=b3, row2[0]=b4
    o_ref    : (tb, 128)       f32   validity in column 0
    """
    bias = b_ref[...]

    # Layer 1: image dot on the MXU; label contribution (incl. b1) pre-folded.
    h = (jnp.dot(ximg_ref[...], w1_ref[...],
                 preferred_element_type=jnp.float32)
         + tlab_ref[...])
    h = jnp.maximum(h, 0.2 * h)                       # LeakyReLU(0.2)

    # Layer 2 (Dropout(0.4) -> identity in eval mode).
    h = jnp.dot(h.astype(jnp.bfloat16), w2_ref[...],
                preferred_element_type=jnp.float32) + bias[0:1, :]
    h = jnp.maximum(h, 0.2 * h)

    # Layer 3 (Dropout(0.4) -> identity in eval mode).
    h = jnp.dot(h.astype(jnp.bfloat16), w3_ref[...],
                preferred_element_type=jnp.float32) + bias[1:2, :]
    h = jnp.maximum(h, 0.2 * h)

    # Layer 4: 512 -> 1 on the MXU against lane-padded w4 so the output store
    # is a full 128-lane (unmasked) block; the wrapper slices column 0.
    o = jnp.dot(h.astype(jnp.bfloat16), w4_ref[...],
                preferred_element_type=jnp.float32) + bias[2:3, :LANE]
    o_ref[...] = o


# ------------------------------ Wrapper --------------------------------------

@functools.partial(jax.jit,
                   static_argnames=("d_img", "d_img_pad", "tb", "b_pad"))
def _disc_forward(img, labels, table, w1_img, w2, w3, w4p, biases,
                  *, d_img, d_img_pad, tb, b_pad):
    b = img.shape[0]
    flat = img.reshape(b, d_img).astype(jnp.bfloat16)
    if d_img_pad != d_img:
        flat = jnp.pad(flat, ((0, 0), (0, d_img_pad - d_img)))
    trows = table[labels]                                 # (b, 512) f32
    if b_pad != b:
        flat = jnp.pad(flat, ((0, b_pad - b), (0, 0)))
        trows = jnp.pad(trows, ((0, b_pad - b), (0, 0)))

    out = pl.pallas_call(
        disc_mlp_kernel,
        out_shape=jax.ShapeDtypeStruct((b_pad, LANE), jnp.float32),
        grid=(b_pad // tb,),
        in_specs=[
            # Activations: tiled over batch.
            pl.BlockSpec((tb, d_img_pad), lambda i: (i, 0)),
            pl.BlockSpec((tb, HIDDEN), lambda i: (i, 0)),
            # Weights / biases: constant block index -> VMEM resident.
            pl.BlockSpec((d_img_pad, HIDDEN), lambda i: (0, 0)),
            pl.BlockSpec((HIDDEN, HIDDEN), lambda i: (0, 0)),
            pl.BlockSpec((HIDDEN, HIDDEN), lambda i: (0, 0)),
            pl.BlockSpec((HIDDEN, LANE), lambda i: (0, 0)),
            pl.BlockSpec((4, HIDDEN), lambda i: (0, 0)),
        ],
        out_specs=pl.BlockSpec((tb, LANE), lambda i: (i, 0)),
        compiler_params=pltpu.CompilerParams(
            dimension_semantics=("parallel",)),
    )(flat, trows, w1_img, w2, w3, w4p, biases)

    # validity: (B, 1) — column 0 of the lane-padded output block.
    return out[:b, :1]


class Discriminator:
    """JAX/Pallas port of the CGAN Discriminator (eval-mode forward)."""

    def __init__(self, n_classes, img_shape, key):
        self.n_classes = n_classes
        self.img_shape = img_shape                       # (C, H, W)
        c, h, w = img_shape
        self.d_img = c * h * w
        self.d_img_pad = _round_up(self.d_img, LANE)

        keys = jax.random.split(key, 9)

        def linear_init(kw, kb, fan_in, fan_out):
            bound = 1.0 / float(fan_in) ** 0.5
            wgt = jax.random.uniform(kw, (fan_in, fan_out), jnp.float32,
                                     -bound, bound)
            bias = jax.random.uniform(kb, (fan_out,), jnp.float32,
                                      -bound, bound)
            return wgt, bias

        d_in = self.d_img + n_classes
        # nn.Embedding(n_classes, n_classes): N(0, 1) init.
        emb = jax.random.normal(keys[0], (n_classes, n_classes), jnp.float32)
        w1, b1 = linear_init(keys[1], keys[2], d_in, HIDDEN)
        w2, b2 = linear_init(keys[3], keys[4], HIDDEN, HIDDEN)
        w3, b3 = linear_init(keys[5], keys[6], HIDDEN, HIDDEN)
        w4, b4 = linear_init(keys[7], keys[8], HIDDEN, 1)

        # f32 masters kept for the non-circular reference check.
        self.f32 = dict(emb=emb, w1=w1, b1=b1, w2=w2, b2=b2, w3=w3, b3=b3,
                        w4=w4, b4=b4)

        # Fold the label path: table[l] = emb[l] @ W1_label + b1  (f32).
        w1_img = w1[:self.d_img]
        w1_lbl = w1[self.d_img:]
        self.table = emb @ w1_lbl + b1[None, :]           # (n_classes, 512)

        # bf16 kernel operands (f32 accumulation on the MXU).
        self.w1_img = jnp.zeros((self.d_img_pad, HIDDEN), jnp.float32)\
            .at[:self.d_img].set(w1_img).astype(jnp.bfloat16)
        self.w2 = w2.astype(jnp.bfloat16)
        self.w3 = w3.astype(jnp.bfloat16)
        # TODO(synk): quantize w2/w3 to int8 (v5e/v6e) or fp8-e4m3 (v7x) to
        # halve weight DMA in the small-batch (DMA-bound) regime.
        self.w4p = jnp.zeros((HIDDEN, LANE), jnp.float32)\
            .at[:, 0].set(w4[:, 0]).astype(jnp.bfloat16)

        biases = jnp.zeros((4, HIDDEN), jnp.float32)
        biases = biases.at[0].set(b2).at[1].set(b3).at[2, 0].set(b4[0])
        self.biases = biases

    def __call__(self, img, labels):
        b = img.shape[0]
        tb, b_pad = _choose_batch_tiling(b)
        return _disc_forward(img, labels, self.table, self.w1_img, self.w2,
                             self.w3, self.w4p, self.biases,
                             d_img=self.d_img, d_img_pad=self.d_img_pad,
                             tb=tb, b_pad=b_pad)


# ------------------------------- References -----------------------------------

def reference_exact(disc, img, labels):
    """Pure-JAX path mirroring the kernel's bf16/f32 numerics exactly."""
    b = img.shape[0]
    flat = img.reshape(b, disc.d_img).astype(jnp.bfloat16)
    if disc.d_img_pad != disc.d_img:
        flat = jnp.pad(flat, ((0, 0), (0, disc.d_img_pad - disc.d_img)))
    h = (jnp.dot(flat, disc.w1_img, preferred_element_type=jnp.float32)
         + disc.table[labels])
    h = jnp.maximum(h, 0.2 * h)
    h = jnp.dot(h.astype(jnp.bfloat16), disc.w2,
                preferred_element_type=jnp.float32) + disc.biases[0:1, :]
    h = jnp.maximum(h, 0.2 * h)
    h = jnp.dot(h.astype(jnp.bfloat16), disc.w3,
                preferred_element_type=jnp.float32) + disc.biases[1:2, :]
    h = jnp.maximum(h, 0.2 * h)
    o = jnp.dot(h.astype(jnp.bfloat16), disc.w4p,
                preferred_element_type=jnp.float32) + disc.biases[2:3, :LANE]
    return o[:, :1]


def reference_f32(disc, img, labels):
    """Full-precision reference using the original (un-cast) f32 weights."""
    p = disc.f32
    b = img.shape[0]
    x = jnp.concatenate([img.reshape(b, -1), p["emb"][labels]], axis=-1)
    h = x @ p["w1"] + p["b1"]
    h = jnp.maximum(h, 0.2 * h)
    h = h @ p["w2"] + p["b2"]
    h = jnp.maximum(h, 0.2 * h)
    h = h @ p["w3"] + p["b3"]
    h = jnp.maximum(h, 0.2 * h)
    return h @ p["w4"] + p["b4"]


# --------------------------------- Main ---------------------------------------

if __name__ == "__main__":
    key = jax.random.PRNGKey(0)
    k_params, k_img, k_lab = jax.random.split(key, 3)

    # Small config consistent with the module: channels=1, img_size=16,
    # n_classes=10 -> d_in = 1*16*16 + 10 = 266.
    n_classes = 10
    img_shape = (1, 16, 16)
    batch = 8

    disc = Discriminator(n_classes, img_shape, k_params)

    img = jax.random.normal(k_img, (batch,) + img_shape, jnp.float32)
    labels = jax.random.randint(k_lab, (batch,), 0, n_classes, jnp.int32)

    validity = jax.block_until_ready(disc(img, labels))
    assert validity.shape == (batch, 1), validity.shape

    # Exact-path check (same bf16 casts as the kernel) — tight tolerance.
    ref_e = reference_exact(disc, img, labels)
    assert jnp.allclose(validity, ref_e, atol=5e-3, rtol=1e-3), \
        float(jnp.max(jnp.abs(validity - ref_e)))

    # Non-circular check against the original f32 model — loose bf16 tolerance.
    ref_f = reference_f32(disc, img, labels)
    assert jnp.allclose(validity, ref_f, atol=8e-2, rtol=0.0), \
        float(jnp.max(jnp.abs(validity - ref_f)))

    # TODO(synk): Dropout(0.4) layers are eval-mode identity; add in-kernel
    # PRNG masking (pltpu.prng_seed / stateful_bernoulli) for training parity.
    print("KERNEL_OK")
</pallas_src>

<mosaic_0001>
module attributes {stable_mosaic.version = 11 : i64} {
  func.func @disc_mlp_kernel(%arg0: i32, %arg1: memref<16x256xbf16, #tpu.memory_space<vmem>>, %arg2: memref<16x512xf32, #tpu.memory_space<vmem>>, %arg3: memref<256x512xbf16, #tpu.memory_space<vmem>>, %arg4: memref<512x512xbf16, #tpu.memory_space<vmem>>, %arg5: memref<512x512xbf16, #tpu.memory_space<vmem>>, %arg6: memref<512x128xbf16, #tpu.memory_space<vmem>>, %arg7: memref<4x512xf32, #tpu.memory_space<vmem>>, %arg8: memref<16x128xf32, #tpu.memory_space<vmem>>) attributes {dimension_semantics = [#tpu.dimension_semantics<parallel>], iteration_bounds = array<i64: 1>, scalar_prefetch = 0 : i64, scratch_operands = 0 : i64, tpu.core_type = #tpu.core_type<tc>, window_params = [{transform_indices = @transform_0, window_bounds = array<i64: 16, 256>}, {transform_indices = @transform_1, window_bounds = array<i64: 16, 512>}, {pipeline_mode = #tpu.pipeline_mode<synchronous>, transform_indices = @transform_2, window_bounds = array<i64: 256, 512>}, {pipeline_mode = #tpu.pipeline_mode<synchronous>, transform_indices = @transform_3, window_bounds = array<i64: 512, 512>}, {pipeline_mode = #tpu.pipeline_mode<synchronous>, transform_indices = @transform_4, window_bounds = array<i64: 512, 512>}, {pipeline_mode = #tpu.pipeline_mode<synchronous>, transform_indices = @transform_5, window_bounds = array<i64: 512, 128>}, {pipeline_mode = #tpu.pipeline_mode<synchronous>, transform_indices = @transform_6, window_bounds = array<i64: 4, 512>}, {transform_indices = @transform_7, window_bounds = array<i64: 16, 128>}]} {
    %c0 = arith.constant 0 : index
    %c0_0 = arith.constant 0 : index
    %0 = vector.load %arg7[%c0, %c0_0] : memref<4x512xf32, #tpu.memory_space<vmem>>, vector<4x512xf32>
    %c0_1 = arith.constant 0 : index
    %c0_2 = arith.constant 0 : index
    %1 = vector.load %arg1[%c0_1, %c0_2] : memref<16x256xbf16, #tpu.memory_space<vmem>>, vector<16x256xbf16>
    %c0_3 = arith.constant 0 : index
    %c0_4 = arith.constant 0 : index
    %2 = vector.load %arg3[%c0_3, %c0_4] : memref<256x512xbf16, #tpu.memory_space<vmem>>, vector<256x512xbf16>
    %cst = arith.constant dense<0.000000e+00> : vector<16x512xf32>
    %3 = tpu.matmul %1, %2, %cst {dimension_numbers = #tpu.dot_dimension_numbers<[1], [0], [0], [1], [0, 0, 1, 1], [], []>} : vector<16x256xbf16>, vector<256x512xbf16>, vector<16x512xf32> -> vector<16x512xf32>
    %c0_5 = arith.constant 0 : index
    %c0_6 = arith.constant 0 : index
    %4 = vector.load %arg2[%c0_5, %c0_6] : memref<16x512xf32, #tpu.memory_space<vmem>>, vector<16x512xf32>
    %5 = arith.addf %3, %4 : vector<16x512xf32>
    %cst_7 = arith.constant 2.000000e-01 : f32
    %6 = vector.broadcast %cst_7 : f32 to vector<16x512xf32>
    %7 = arith.mulf %6, %5 : vector<16x512xf32>
    %8 = arith.maximumf %5, %7 : vector<16x512xf32>
    %9 = arith.truncf %8 : vector<16x512xf32> to vector<16x512xbf16>
    %c0_8 = arith.constant 0 : index
    %c0_9 = arith.constant 0 : index
    %10 = vector.load %arg4[%c0_8, %c0_9] : memref<512x512xbf16, #tpu.memory_space<vmem>>, vector<512x512xbf16>
    %cst_10 = arith.constant dense<0.000000e+00> : vector<16x512xf32>
    %11 = tpu.matmul %9, %10, %cst_10 {dimension_numbers = #tpu.dot_dimension_numbers<[1], [0], [0], [1], [0, 0, 1, 1], [], []>} : vector<16x512xbf16>, vector<512x512xbf16>, vector<16x512xf32> -> vector<16x512xf32>
    %12 = vector.extract_strided_slice %0 {offsets = [0, 0], sizes = [1, 512], strides = [1, 1]} : vector<4x512xf32> to vector<1x512xf32>
    %13 = vector.broadcast %12 : vector<1x512xf32> to vector<16x512xf32>
    %14 = arith.addf %11, %13 : vector<16x512xf32>
    %cst_11 = arith.constant 2.000000e-01 : f32
    %15 = vector.broadcast %cst_11 : f32 to vector<16x512xf32>
    %16 = arith.mulf %15, %14 : vector<16x512xf32>
    %17 = arith.maximumf %14, %16 : vector<16x512xf32>
    %18 = arith.truncf %17 : vector<16x512xf32> to vector<16x512xbf16>
    %c0_12 = arith.constant 0 : index
    %c0_13 = arith.constant 0 : index
    %19 = vector.load %arg5[%c0_12, %c0_13] : memref<512x512xbf16, #tpu.memory_space<vmem>>, vector<512x512xbf16>
    %cst_14 = arith.constant dense<0.000000e+00> : vector<16x512xf32>
    %20 = tpu.matmul %18, %19, %cst_14 {dimension_numbers = #tpu.dot_dimension_numbers<[1], [0], [0], [1], [0, 0, 1, 1], [], []>} : vector<16x512xbf16>, vector<512x512xbf16>, vector<16x512xf32> -> vector<16x512xf32>
    %21 = vector.extract_strided_slice %0 {offsets = [1, 0], sizes = [1, 512], strides = [1, 1]} : vector<4x512xf32> to vector<1x512xf32>
    %22 = vector.broadcast %21 : vector<1x512xf32> to vector<16x512xf32>
    %23 = arith.addf %20, %22 : vector<16x512xf32>
    %cst_15 = arith.constant 2.000000e-01 : f32
    %24 = vector.broadcast %cst_15 : f32 to vector<16x512xf32>
    %25 = arith.mulf %24, %23 : vector<16x512xf32>
    %26 = arith.maximumf %23, %25 : vector<16x512xf32>
    %27 = arith.truncf %26 : vector<16x512xf32> to vector<16x512xbf16>
    %c0_16 = arith.constant 0 : index
    %c0_17 = arith.constant 0 : index
    %28 = vector.load %arg6[%c0_16, %c0_17] : memref<512x128xbf16, #tpu.memory_space<vmem>>, vector<512x128xbf16>
    %cst_18 = arith.constant dense<0.000000e+00> : vector<16x128xf32>
    %29 = tpu.matmul %27, %28, %cst_18 {dimension_numbers = #tpu.dot_dimension_numbers<[1], [0], [0], [1], [0, 0, 1, 1], [], []>} : vector<16x512xbf16>, vector<512x128xbf16>, vector<16x128xf32> -> vector<16x128xf32>
    %30 = vector.extract_strided_slice %0 {offsets = [2, 0], sizes = [1, 128], strides = [1, 1]} : vector<4x512xf32> to vector<1x128xf32>
    %31 = vector.broadcast %30 : vector<1x128xf32> to vector<16x128xf32>
    %32 = arith.addf %29, %31 : vector<16x128xf32>
    %c0_19 = arith.constant 0 : index
    %c0_20 = arith.constant 0 : index
    %33 = vector.load %arg8[%c0_19, %c0_20] : memref<16x128xf32, #tpu.memory_space<vmem>>, vector<16x128xf32>
    tpu.vector_store %arg8[%c0_19, %c0_20], %32 {strides = array<i32>} : memref<16x128xf32, #tpu.memory_space<vmem>>, vector<16x128xf32>,
    return
  }
  func.func @transform_0(%arg0: i32) -> (i32, i32) {
    %c0_i32 = arith.constant 0 : i32
    %c0_i32_0 = arith.constant 0 : i32
    return %arg0, %c0_i32 : i32, i32
  }
  func.func @transform_1(%arg0: i32) -> (i32, i32) {
    %c0_i32 = arith.constant 0 : i32
    %c0_i32_0 = arith.constant 0 : i32
    return %arg0, %c0_i32 : i32, i32
  }
  func.func @transform_2(%arg0: i32) -> (i32, i32) {
    %c0_i32 = arith.constant 0 : i32
    %c0_i32_0 = arith.constant 0 : i32
    %c0_i32_1 = arith.constant 0 : i32
    return %c0_i32, %c0_i32_0 : i32, i32
  }
  func.func @transform_3(%arg0: i32) -> (i32, i32) {
    %c0_i32 = arith.constant 0 : i32
    %c0_i32_0 = arith.constant 0 : i32
    %c0_i32_1 = arith.constant 0 : i32
    return %c0_i32, %c0_i32_0 : i32, i32
  }
  func.func @transform_4(%arg0: i32) -> (i32, i32) {
    %c0_i32 = arith.constant 0 : i32
    %c0_i32_0 = arith.constant 0 : i32
    %c0_i32_1 = arith.constant 0 : i32
    return %c0_i32, %c0_i32_0 : i32, i32
  }
  func.func @transform_5(%arg0: i32) -> (i32, i32) {
    %c0_i32 = arith.constant 0 : i32
    %c0_i32_0 = arith.constant 0 : i32
    %c0_i32_1 = arith.constant 0 : i32
    return %c0_i32, %c0_i32_0 : i32, i32
  }
  func.func @transform_6(%arg0: i32) -> (i32, i32) {
    %c0_i32 = arith.constant 0 : i32
    %c0_i32_0 = arith.constant 0 : i32
    %c0_i32_1 = arith.constant 0 : i32
    return %c0_i32, %c0_i32_0 : i32, i32
  }
  func.func @transform_7(%arg0: i32) -> (i32, i32) {
    %c0_i32 = arith.constant 0 : i32
    %c0_i32_0 = arith.constant 0 : i32
    return %arg0, %c0_i32 : i32, i32
  }
}

</mosaic_0001>

<llo_original>
// kernel: _disc_forward.1
$region0: #{_disc_forward.1}
  #allocation0 [shape = 'u32[]', space=smem, size = 0x4, offset = 0x4, fixed_abs, tag = 'smem constant byte address 0x4 - core index']
  #allocation1 [shape = 'u32[144,128]{1,0:T(1,128)}', space=vmem, size = 0x12000, scoped, tag = 'internal scratch']
  %s0 = inlined_call_operand.vmem [shape: bf16[16,256], index: 0, kind: input, shape index: {}]
  %s1 = inlined_call_operand.vmem [shape: f32[16,512], index: 1, kind: input, shape index: {}]
  %s2 = inlined_call_operand.vmem [shape: bf16[256,512], index: 2, kind: input, shape index: {}]
  %s3 = inlined_call_operand.hbm [shape: bf16[512,512], index: 3, kind: input, shape index: {}]
  %s4 = inlined_call_operand.hbm [shape: bf16[512,512], index: 4, kind: input, shape index: {}]
  %s5 = inlined_call_operand.hbm [shape: bf16[512,128], index: 5, kind: input, shape index: {}]
  %s6 = inlined_call_operand.vmem [shape: f32[4,512], index: 6, kind: input, shape index: {}]
  %s7 = inlined_call_operand.vmem [shape: f32[16,128], index: 7, kind: output, shape index: {}]
  %s8 = sld [smem:[#allocation0]]
  $region50: #{_disc_forward.1} parent=0
    _
  %s10 = ssub.s32 1, %s8
  %s11 = scalar_select 0, %s10, %s8
  $region1: #{_disc_forward.1} parent=0
    #allocation2 [shape = 'u8[524288]{0}', space=vmem, size = 0x80000, scoped, tag = 'input window, operand 3, single buffered']
    #allocation3 [shape = 's32[1]{0}', space=sflag, size = 0x4, scoped, tag = 'scoped memory for _disc_forward.1']
    #allocation4 [shape = 'u8[524288]{0}', space=vmem, size = 0x80000, scoped, tag = 'input window, operand 4, single buffered']
    #allocation5 [shape = 's32[1]{0}', space=sflag, size = 0x4, scoped, tag = 'scoped memory for _disc_forward.1']
    #allocation6 [shape = 'u8[131072]{0}', space=vmem, size = 0x20000, scoped, tag = 'input window, operand 5, single buffered']
    %12 = vsyncpa [#allocation3], 0
    %13 = vsyncpa [#allocation5], 0
    // Predicated region
    $region2: #{_disc_forward.1} parent=1 // pred_check
      _
    $region3: #{_disc_forward.1} parent=1 // pred_check_branch
      %15 = sbr.rel (0) target = $region5
    $region4: #{_disc_forward.1} parent=1 // pred_region
      _
    $region5: #{_disc_forward.1} parent=1 // pred_fallthru
      _
    // Predicated region
    $region6: #{_disc_forward.1} parent=1 // pred_check
      _
    $region7: #{_disc_forward.1} parent=1 // pred_check_branch
      %17 = sbr.rel (0) target = $region9
    $region8: #{_disc_forward.1} parent=1 // pred_region
      _
    $region9: #{_disc_forward.1} parent=1 // pred_fallthru
      _
    // Predicated region
    $region10: #{_disc_forward.1} parent=1 // pred_check
      _
    $region11: #{_disc_forward.1} parent=1 // pred_check_branch
      %19 = sbr.rel (0) target = $region13
    $region12: #{_disc_forward.1} parent=1 // pred_region
      _
    $region13: #{_disc_forward.1} parent=1 // pred_fallthru
      _
    // Predicated region
    $region14: #{_disc_forward.1} parent=1 // pred_check
      _
    $region15: #{_disc_forward.1} parent=1 // pred_check_branch
      %21 = sbr.rel (0) target = $region17
    $region16: #{_disc_forward.1} parent=1 // pred_region
      %s23 = ssub.s32 16384, 16384
      %24 = vsyncadd [#allocation3], %s23
      %s25 = sshll.u32 [#allocation2], 4
      %s26 = int_to_ptr.vmem [resolvable:$true] %s25
      %31 = dma.hbm_to_vmem [thread:$0]  %s3, 16384, %s26, [#allocation3], 256, 256, 16
    $region17: #{_disc_forward.1} parent=1 // pred_fallthru
      _
    // Predicated region
    $region18: #{_disc_forward.1} parent=1 // pred_check
      _
    $region19: #{_disc_forward.1} parent=1 // pred_check_branch
      %33 = sbr.rel (0) target = $region21
    $region20: #{_disc_forward.1} parent=1 // pred_region
      %s35 = ssub.s32 16384, 16384
      %36 = vsyncadd [#allocation5], %s35
      %s37 = sshll.u32 [#allocation4], 4
      %s38 = int_to_ptr.vmem [resolvable:$true] %s37
      %43 = dma.hbm_to_vmem [thread:$0]  %s4, 16384, %s38, [#allocation5], 256, 256, 16
    $region21: #{_disc_forward.1} parent=1 // pred_fallthru
      _
    // Predicated region
    $region22: #{_disc_forward.1} parent=1 // pred_check
      _
    $region23: #{_disc_forward.1} parent=1 // pred_check_branch
      %45 = sbr.rel (0) target = $region25
    $region24: #{_disc_forward.1} parent=1 // pred_region
      %s47 = ssub.s32 4096, 4096
      %48 = vsyncadd [#allocation5], %s47
      %s49 = sshll.u32 [#allocation6], 4
      %s50 = int_to_ptr.vmem [resolvable:$true] %s49
      %55 = dma.hbm_to_vmem [thread:$0]  %s5, 4096, %s50, [#allocation5], 64, 64, 4
    $region25: #{_disc_forward.1} parent=1 // pred_fallthru
      _
    // Predicated region
    $region26: #{_disc_forward.1} parent=1 // pred_check
      _
    $region27: #{_disc_forward.1} parent=1 // pred_check_branch
      %57 = sbr.rel (0) target = $region29
    $region28: #{_disc_forward.1} parent=1 // pred_region
      _
    $region29: #{_disc_forward.1} parent=1 // pred_fallthru
      _
    // Predicated region
    $region30: #{_disc_forward.1} parent=1 // pred_check
      _
    $region31: #{_disc_forward.1} parent=1 // pred_check_branch
      %59 = sbr.rel (0) target = $region33
    $region32: #{_disc_forward.1} parent=1 // pred_region
      %60 = dma.done [#allocation3], 16384
    $region33: #{_disc_forward.1} parent=1 // pred_fallthru
      _
    // Predicated region
    $region34: #{_disc_forward.1} parent=1 // pred_check
      _
    $region35: #{_disc_forward.1} parent=1 // pred_check_branch
      %62 = sbr.rel (0) target = $region37
    $region36: #{_disc_forward.1} parent=1 // pred_region
      %63 = dma.done [#allocation5], 16384
    $region37: #{_disc_forward.1} parent=1 // pred_fallthru
      _
    // Predicated region
    $region38: #{_disc_forward.1} parent=1 // pred_check
      _
    $region39: #{_disc_forward.1} parent=1 // pred_check_branch
      %65 = sbr.rel (0) target = $region41
    $region40: #{_disc_forward.1} parent=1 // pred_region
      %66 = dma.done [#allocation5], 4096
    $region41: #{_disc_forward.1} parent=1 // pred_fallthru
      _
    %v68 = vld [vmem:[%s6] sm:$0xff]
    %v69 = vld [vmem:[%s6 + $0x8] sm:$0xff]
    %v70 = vld [vmem:[%s0] sm:$0xff]
    %v71 = vld [vmem:[%s0 + $0x8] sm:$0xff]
    %v72 = vld [vmem:[%s2] sm:$0xff]
    %v73 = vld [vmem:[%s2 + $0x8] sm:$0xff]
    %v74 = vld [vmem:[%s2 + $0x10] sm:$0xff]
    %v75 = vld [vmem:[%s2 + $0x18] sm:$0xff]
    %v76 = vld [vmem:[%s2 + $0x20] sm:$0xff]
    %v77 = vld [vmem:[%s2 + $0x28] sm:$0xff]
    %v78 = vld [vmem:[%s2 + $0x30] sm:$0xff]
    %v79 = vld [vmem:[%s2 + $0x38] sm:$0xff]
    %v80 = vld [vmem:[%s2 + $0x40] sm:$0xff]
    %v81 = vld [vmem:[%s2 + $0x48] sm:$0xff]
    %v82 = vld [vmem:[%s2 + $0x50] sm:$0xff]
    %v83 = vld [vmem:[%s2 + $0x58] sm:$0xff]
    %v84 = vld [vmem:[%s2 + $0x60] sm:$0xff]
    %v85 = vld [vmem:[%s2 + $0x68] sm:$0xff]
    %v86 = vld [vmem:[%s2 + $0x70] sm:$0xff]
    %v87 = vld [vmem:[%s2 + $0x78] sm:$0xff]
    %v88 = vld [vmem:[%s2 + $0x80] sm:$0xff]
    %v89 = vld [vmem:[%s2 + $0x88] sm:$0xff]
    %v90 = vld [vmem:[%s2 + $0x90] sm:$0xff]
    %v91 = vld [vmem:[%s2 + $0x98] sm:$0xff]
    %v92 = vld [vmem:[%s2 + $0xa0] sm:$0xff]
    %v93 = vld [vmem:[%s2 + $0xa8] sm:$0xff]
    %v94 = vld [vmem:[%s2 + $0xb0] sm:$0xff]
    %v95 = vld [vmem:[%s2 + $0xb8] sm:$0xff]
    %v96 = vld [vmem:[%s2 + $0xc0] sm:$0xff]
    %v97 = vld [vmem:[%s2 + $0xc8] sm:$0xff]
    %v98 = vld [vmem:[%s2 + $0xd0] sm:$0xff]
    %v99 = vld [vmem:[%s2 + $0xd8] sm:$0xff]
    %v100 = vld [vmem:[%s2 + $0xe0] sm:$0xff]
    %v101 = vld [vmem:[%s2 + $0xe8] sm:$0xff]
    %v102 = vld [vmem:[%s2 + $0xf0] sm:$0xff]
    %v103 = vld [vmem:[%s2 + $0xf8] sm:$0xff]
    %v104 = vld [vmem:[%s2 + $0x100] sm:$0xff]
    %v105 = vld [vmem:[%s2 + $0x108] sm:$0xff]
    %v106 = vld [vmem:[%s2 + $0x110] sm:$0xff]
    %v107 = vld [vmem:[%s2 + $0x118] sm:$0xff]
    %v108 = vld [vmem:[%s2 + $0x120] sm:$0xff]
    %v109 = vld [vmem:[%s2 + $0x128] sm:$0xff]
    %v110 = vld [vmem:[%s2 + $0x130] sm:$0xff]
    %v111 = vld [vmem:[%s2 + $0x138] sm:$0xff]
    %v112 = vld [vmem:[%s2 + $0x140] sm:$0xff]
    %v113 = vld [vmem:[%s2 + $0x148] sm:$0xff]
    %v114 = vld [vmem:[%s2 + $0x150] sm:$0xff]
    %v115 = vld [vmem:[%s2 + $0x158] sm:$0xff]
    %v116 = vld [vmem:[%s2 + $0x160] sm:$0xff]
    %v117 = vld [vmem:[%s2 + $0x168] sm:$0xff]
    %v118 = vld [vmem:[%s2 + $0x170] sm:$0xff]
    %v119 = vld [vmem:[%s2 + $0x178] sm:$0xff]
    %v120 = vld [vmem:[%s2 + $0x180] sm:$0xff]
    %v121 = vld [vmem:[%s2 + $0x188] sm:$0xff]
    %v122 = vld [vmem:[%s2 + $0x190] sm:$0xff]
    %v123 = vld [vmem:[%s2 + $0x198] sm:$0xff]
    %v124 = vld [vmem:[%s2 + $0x1a0] sm:$0xff]
    %v125 = vld [vmem:[%s2 + $0x1a8] sm:$0xff]
    %v126 = vld [vmem:[%s2 + $0x1b0] sm:$0xff]
    %v127 = vld [vmem:[%s2 + $0x1b8] sm:$0xff]
    %v128 = vld [vmem:[%s2 + $0x1c0] sm:$0xff]
    %v129 = vld [vmem:[%s2 + $0x1c8] sm:$0xff]
    %v130 = vld [vmem:[%s2 + $0x1d0] sm:$0xff]
    %v131 = vld [vmem:[%s2 + $0x1d8] sm:$0xff]
    %v132 = vld [vmem:[%s2 + $0x1e0] sm:$0xff]
    %v133 = vld [vmem:[%s2 + $0x1e8] sm:$0xff]
    %v134 = vld [vmem:[%s2 + $0x1f0] sm:$0xff]
    %v135 = vld [vmem:[%s2 + $0x1f8] sm:$0xff]
    %v136 = vld [vmem:[%s1] sm:$0xff]
    %v137 = vld [vmem:[%s1 + $0x8] sm:$0xff]
    %v138 = vld [vmem:[%s1 + $0x10] sm:$0xff]
    %v139 = vld [vmem:[%s1 + $0x18] sm:$0xff]
    %v140 = vld [vmem:[%s1 + $0x20] sm:$0xff]
    %v141 = vld [vmem:[%s1 + $0x28] sm:$0xff]
    %v142 = vld [vmem:[%s1 + $0x30] sm:$0xff]
    %v143 = vld [vmem:[%s1 + $0x38] sm:$0xff]
    %v146 = vunpack.c.l.b16 %v70
    %v147 = vunpack.c.h.b16 %v70
    %v148 = vunpack.c.l.b16 %v71
    %v149 = vunpack.c.h.b16 %v71
    %v150 = vpack.c.b16 %v148, %v146
    %v151 = vpack.c.b16 %v149, %v147
    %v218 = vunpack.c.l.b16 %v72
    %v219 = vunpack.c.h.b16 %v72
    %v220 = vunpack.c.l.b16 %v73
    %v221 = vunpack.c.h.b16 %v73
    %v222 = vunpack.c.l.b16 %v74
    %v223 = vunpack.c.h.b16 %v74
    %v224 = vunpack.c.l.b16 %v75
    %v225 = vunpack.c.h.b16 %v75
    %v226 = vunpack.c.l.b16 %v76
    %v227 = vunpack.c.h.b16 %v76
    %v228 = vunpack.c.l.b16 %v77
    %v229 = vunpack.c.h.b16 %v77
    %v230 = vunpack.c.l.b16 %v78
    %v231 = vunpack.c.h.b16 %v78
    %v232 = vunpack.c.l.b16 %v79
    %v233 = vunpack.c.h.b16 %v79
    %v234 = vunpack.c.l.b16 %v80
    %v235 = vunpack.c.h.b16 %v80
    %v236 = vunpack.c.l.b16 %v81
    %v237 = vunpack.c.h.b16 %v81
    %v238 = vunpack.c.l.b16 %v82
    %v239 = vunpack.c.h.b16 %v82
    %v240 = vunpack.c.l.b16 %v83
    %v241 = vunpack.c.h.b16 %v83
    %v242 = vunpack.c.l.b16 %v84
    %v243 = vunpack.c.h.b16 %v84
    %v244 = vunpack.c.l.b16 %v85
    %v245 = vunpack.c.h.b16 %v85
    %v246 = vunpack.c.l.b16 %v86
    %v247 = vunpack.c.h.b16 %v86
    %v248 = vunpack.c.l.b16 %v87
    %v249 = vunpack.c.h.b16 %v87
    %v250 = vunpack.c.l.b16 %v88
    %v251 = vunpack.c.h.b16 %v88
    %v252 = vunpack.c.l.b16 %v89
    %v253 = vunpack.c.h.b16 %v89
    %v254 = vunpack.c.l.b16 %v90
    %v255 = vunpack.c.h.b16 %v90
    %v256 = vunpack.c.l.b16 %v91
    %v257 = vunpack.c.h.b16 %v91
    %v258 = vunpack.c.l.b16 %v92
    %v259 = vunpack.c.h.b16 %v92
    %v260 = vunpack.c.l.b16 %v93
    %v261 = vunpack.c.h.b16 %v93
    %v262 = vunpack.c.l.b16 %v94
    %v263 = vunpack.c.h.b16 %v94
    %v264 = vunpack.c.l.b16 %v95
    %v265 = vunpack.c.h.b16 %v95
    %v266 = vunpack.c.l.b16 %v96
    %v267 = vunpack.c.h.b16 %v96
    %v268 = vunpack.c.l.b16 %v97
    %v269 = vunpack.c.h.b16 %v97
    %v270 = vunpack.c.l.b16 %v98
    %v271 = vunpack.c.h.b16 %v98
    %v272 = vunpack.c.l.b16 %v99
    %v273 = vunpack.c.h.b16 %v99
    %v274 = vunpack.c.l.b16 %v100
    %v275 = vunpack.c.h.b16 %v100
    %v276 = vunpack.c.l.b16 %v101
    %v277 = vunpack.c.h.b16 %v101
    %v278 = vunpack.c.l.b16 %v102
    %v279 = vunpack.c.h.b16 %v102
    %v280 = vunpack.c.l.b16 %v103
    %v281 = vunpack.c.h.b16 %v103
    %v282 = vunpack.c.l.b16 %v104
    %v283 = vunpack.c.h.b16 %v104
    %v284 = vunpack.c.l.b16 %v105
    %v285 = vunpack.c.h.b16 %v105
    %v286 = vunpack.c.l.b16 %v106
    %v287 = vunpack.c.h.b16 %v106
    %v288 = vunpack.c.l.b16 %v107
    %v289 = vunpack.c.h.b16 %v107
    %v290 = vunpack.c.l.b16 %v108
    %v291 = vunpack.c.h.b16 %v108
    %v292 = vunpack.c.l.b16 %v109
    %v293 = vunpack.c.h.b16 %v109
    %v294 = vunpack.c.l.b16 %v110
    %v295 = vunpack.c.h.b16 %v110
    %v296 = vunpack.c.l.b16 %v111
    %v297 = vunpack.c.h.b16 %v111
    %v298 = vunpack.c.l.b16 %v112
    %v299 = vunpack.c.h.b16 %v112
    %v300 = vunpack.c.l.b16 %v113
    %v301 = vunpack.c.h.b16 %v113
    %v302 = vunpack.c.l.b16 %v114
    %v303 = vunpack.c.h.b16 %v114
    %v304 = vunpack.c.l.b16 %v115
    %v305 = vunpack.c.h.b16 %v115
    %v306 = vunpack.c.l.b16 %v116
    %v307 = vunpack.c.h.b16 %v116
    %v308 = vunpack.c.l.b16 %v117
    %v309 = vunpack.c.h.b16 %v117
    %v310 = vunpack.c.l.b16 %v118
    %v311 = vunpack.c.h.b16 %v118
    %v312 = vunpack.c.l.b16 %v119
    %v313 = vunpack.c.h.b16 %v119
    %v314 = vunpack.c.l.b16 %v120
    %v315 = vunpack.c.h.b16 %v120
    %v316 = vunpack.c.l.b16 %v121
    %v317 = vunpack.c.h.b16 %v121
    %v318 = vunpack.c.l.b16 %v122
    %v319 = vunpack.c.h.b16 %v122
    %v320 = vunpack.c.l.b16 %v123
    %v321 = vunpack.c.h.b16 %v123
    %v322 = vunpack.c.l.b16 %v124
    %v323 = vunpack.c.h.b16 %v124
    %v324 = vunpack.c.l.b16 %v125
    %v325 = vunpack.c.h.b16 %v125
    %v326 = vunpack.c.l.b16 %v126
    %v327 = vunpack.c.h.b16 %v126
    %v328 = vunpack.c.l.b16 %v127
    %v329 = vunpack.c.h.b16 %v127
    %v330 = vunpack.c.l.b16 %v128
    %v331 = vunpack.c.h.b16 %v128
    %v332 = vunpack.c.l.b16 %v129
    %v333 = vunpack.c.h.b16 %v129
    %v334 = vunpack.c.l.b16 %v130
    %v335 = vunpack.c.h.b16 %v130
    %v336 = vunpack.c.l.b16 %v131
    %v337 = vunpack.c.h.b16 %v131
    %v338 = vunpack.c.l.b16 %v132
    %v339 = vunpack.c.h.b16 %v132
    %v340 = vunpack.c.l.b16 %v133
    %v341 = vunpack.c.h.b16 %v133
    %v342 = vunpack.c.l.b16 %v134
    %v343 = vunpack.c.h.b16 %v134
    %v344 = vunpack.c.l.b16 %v135
    %v345 = vunpack.c.h.b16 %v135
    %v346 = vpack.c.b16 %v222, %v218
    %v347 = vpack.c.b16 %v223, %v219
    %v348 = vpack.c.b16 %v224, %v220
    %v349 = vpack.c.b16 %v225, %v221
    %v350 = vpack.c.b16 %v230, %v226
    %v351 = vpack.c.b16 %v231, %v227
    %v352 = vpack.c.b16 %v232, %v228
    %v353 = vpack.c.b16 %v233, %v229
    %v354 = vpack.c.b16 %v238, %v234
    %v355 = vpack.c.b16 %v239, %v235
    %v356 = vpack.c.b16 %v240, %v236
    %v357 = vpack.c.b16 %v241, %v237
    %v358 = vpack.c.b16 %v246, %v242
    %v359 = vpack.c.b16 %v247, %v243
    %v360 = vpack.c.b16 %v248, %v244
    %v361 = vpack.c.b16 %v249, %v245
    %v362 = vpack.c.b16 %v254, %v250
    %v363 = vpack.c.b16 %v255, %v251
    %v364 = vpack.c.b16 %v256, %v252
    %v365 = vpack.c.b16 %v257, %v253
    %v366 = vpack.c.b16 %v262, %v258
    %v367 = vpack.c.b16 %v263, %v259
    %v368 = vpack.c.b16 %v264, %v260
    %v369 = vpack.c.b16 %v265, %v261
    %v370 = vpack.c.b16 %v270, %v266
    %v371 = vpack.c.b16 %v271, %v267
    %v372 = vpack.c.b16 %v272, %v268
    %v373 = vpack.c.b16 %v273, %v269
    %v374 = vpack.c.b16 %v278, %v274
    %v375 = vpack.c.b16 %v279, %v275
    %v376 = vpack.c.b16 %v280, %v276
    %v377 = vpack.c.b16 %v281, %v277
    %v378 = vpack.c.b16 %v286, %v282
    %v379 = vpack.c.b16 %v287, %v283
    %v380 = vpack.c.b16 %v288, %v284
    %v381 = vpack.c.b16 %v289, %v285
    %v382 = vpack.c.b16 %v294, %v290
    %v383 = vpack.c.b16 %v295, %v291
    %v384 = vpack.c.b16 %v296, %v292
    %v385 = vpack.c.b16 %v297, %v293
    %v386 = vpack.c.b16 %v302, %v298
    %v387 = vpack.c.b16 %v303, %v299
    %v388 = vpack.c.b16 %v304, %v300
    %v389 = vpack.c.b16 %v305, %v301
    %v390 = vpack.c.b16 %v310, %v306
    %v391 = vpack.c.b16 %v311, %v307
    %v392 = vpack.c.b16 %v312, %v308
    %v393 = vpack.c.b16 %v313, %v309
    %v394 = vpack.c.b16 %v318, %v314
    %v395 = vpack.c.b16 %v319, %v315
    %v396 = vpack.c.b16 %v320, %v316
    %v397 = vpack.c.b16 %v321, %v317
    %v398 = vpack.c.b16 %v326, %v322
    %v399 = vpack.c.b16 %v327, %v323
    %v400 = vpack.c.b16 %v328, %v324
    %v401 = vpack.c.b16 %v329, %v325
    %v402 = vpack.c.b16 %v334, %v330
    %v403 = vpack.c.b16 %v335, %v331
    %v404 = vpack.c.b16 %v336, %v332
    %v405 = vpack.c.b16 %v337, %v333
    %v406 = vpack.c.b16 %v342, %v338
    %v407 = vpack.c.b16 %v343, %v339
    %v408 = vpack.c.b16 %v344, %v340
    %v409 = vpack.c.b16 %v345, %v341
    %474 = vmatprep.subr.bf16.mxu0 %v347
    %475 = vmatpush1.bf16.msra.mxu0 %v346
    %476 = vmatprep.subr.bf16.mxu0 %v351
    %477 = vmatpush1.bf16.msra.mxu0 %v350
    %478 = vmatprep.subr.bf16.mxu0 %v355
    %479 = vmatpush1.bf16.msra.mxu0 %v354
    %480 = vmatprep.subr.bf16.mxu0 %v359
    %481 = vmatpush1.bf16.msra.mxu0 %v358
    %482 = vmatprep.subr.bf16.mxu0 %v363
    %483 = vmatpush1.bf16.msra.mxu0 %v362
    %484 = vmatprep.subr.bf16.mxu0 %v367
    %485 = vmatpush1.bf16.msra.mxu0 %v366
    %486 = vmatprep.subr.bf16.mxu0 %v371
    %487 = vmatpush1.bf16.msra.mxu0 %v370
    %488 = vmatprep.subr.bf16.mxu0 %v375
    %489 = vmatpush1.bf16.msra.mxu0 %v374
    %490 = vmatprep.subr.bf16.mxu0 %v379
    %491 = vmatpush1.bf16.msra.mxu0 %v378
    %492 = vmatprep.subr.bf16.mxu0 %v383
    %493 = vmatpush1.bf16.msra.mxu0 %v382
    %494 = vmatprep.subr.bf16.mxu0 %v387
    %495 = vmatpush1.bf16.msra.mxu0 %v386
    %496 = vmatprep.subr.bf16.mxu0 %v391
    %497 = vmatpush1.bf16.msra.mxu0 %v390
    %498 = vmatprep.subr.bf16.mxu0 %v395
    %499 = vmatpush1.bf16.msra.mxu0 %v394
    %500 = vmatprep.subr.bf16.mxu0 %v399
    %501 = vmatpush1.bf16.msra.mxu0 %v398
    %502 = vmatprep.subr.bf16.mxu0 %v403
    %503 = vmatpush1.bf16.msra.mxu0 %v402
    %504 = vmatprep.subr.bf16.mxu0 %v407
    %505 = vmatpush1.bf16.msra.mxu0 %v406
    %506 = vmatprep.mubr.bf16.mxu0 %v151
    %507 = vmatmul.mubr.bf16.gmra.mrb[0].mxu0 %v150
    %v508 = vpop.f32.mrb[0].mxu0
    %v509 = vadd.f32 %v136, %v508
    %v510 = vpop.f32.mrb[0].mxu0
    %v511 = vadd.f32 %v137, %v510
    %v512 = vpop.f32.mrb[0].mxu0
    %v513 = vadd.f32 %v140, %v512
    %v514 = vpop.f32.mrb[0].mxu0
    %v515 = vadd.f32 %v141, %v514
    %516 = vdwg.mxu0
    %517 = vmatprep.subr.bf16.mxu0 %v349
    %518 = vmatpush1.bf16.msra.mxu0 %v348
    %519 = vmatprep.subr.bf16.mxu0 %v353
    %520 = vmatpush1.bf16.msra.mxu0 %v352
    %521 = vmatprep.subr.bf16.mxu0 %v357
    %522 = vmatpush1.bf16.msra.mxu0 %v356
    %523 = vmatprep.subr.bf16.mxu0 %v361
    %524 = vmatpush1.bf16.msra.mxu0 %v360
    %525 = vmatprep.subr.bf16.mxu0 %v365
    %526 = vmatpush1.bf16.msra.mxu0 %v364
    %527 = vmatprep.subr.bf16.mxu0 %v369
    %528 = vmatpush1.bf16.msra.mxu0 %v368
    %529 = vmatprep.subr.bf16.mxu0 %v373
    %530 = vmatpush1.bf16.msra.mxu0 %v372
    %531 = vmatprep.subr.bf16.mxu0 %v377
    %532 = vmatpush1.bf16.msra.mxu0 %v376
    %533 = vmatprep.subr.bf16.mxu0 %v381
    %534 = vmatpush1.bf16.msra.mxu0 %v380
    %535 = vmatprep.subr.bf16.mxu0 %v385
    %536 = vmatpush1.bf16.msra.mxu0 %v384
    %537 = vmatprep.subr.bf16.mxu0 %v389
    %538 = vmatpush1.bf16.msra.mxu0 %v388
    %539 = vmatprep.subr.bf16.mxu0 %v393
    %540 = vmatpush1.bf16.msra.mxu0 %v392
    %541 = vmatprep.subr.bf16.mxu0 %v397
    %542 = vmatpush1.bf16.msra.mxu0 %v396
    %543 = vmatprep.subr.bf16.mxu0 %v401
    %544 = vmatpush1.bf16.msra.mxu0 %v400
    %545 = vmatprep.subr.bf16.mxu0 %v405
    %546 = vmatpush1.bf16.msra.mxu0 %v404
    %547 = vmatprep.subr.bf16.mxu0 %v409
    %548 = vmatpush1.bf16.msra.mxu0 %v408
    %549 = vmatprep.mubr.bf16.mxu0 %v151
    %550 = vmatmul.mubr.bf16.gmra.mrb[0].mxu0 %v150
    %v551 = vpop.f32.mrb[0].mxu0
    %v552 = vadd.f32 %v138, %v551
    %v553 = vpop.f32.mrb[0].mxu0
    %v554 = vadd.f32 %v139, %v553
    %v555 = vpop.f32.mrb[0].mxu0
    %v556 = vadd.f32 %v142, %v555
    %v557 = vpop.f32.mrb[0].mxu0
    %v558 = vadd.f32 %v143, %v557
    %559 = vdwg.mxu0
    %v560 = vmul.f32 %v509, 0.2
    %v561 = vmul.f32 %v511, 0.2
    %v562 = vmul.f32 %v552, 0.2
    %v563 = vmul.f32 %v554, 0.2
    %v564 = vmul.f32 %v513, 0.2
    %v565 = vmul.f32 %v515, 0.2
    %v566 = vmul.f32 %v556, 0.2
    %v567 = vmul.f32 %v558, 0.2
    %v568 = vmax.f32 %v509, %v560
    %v569 = vmax.f32 %v511, %v561
    %v570 = vmax.f32 %v552, %v562
    %v571 = vmax.f32 %v554, %v563
    %v572 = vmax.f32 %v513, %v564
    %v573 = vmax.f32 %v515, %v565
    %v574 = vmax.f32 %v556, %v566
    %v575 = vmax.f32 %v558, %v567
    %v576 = vpack.c.bf16 %v572, %v568
    %v577 = vpack.c.bf16 %v573, %v569
    %v578 = vpack.c.bf16 %v574, %v570
    %v579 = vpack.c.bf16 %v575, %v571
    %v580 = vld [vmem:[#allocation2] sm:$0xff]
    %v581 = vld [vmem:[#allocation2 + $0x8] sm:$0xff]
    %v582 = vld [vmem:[#allocation2 + $0x10] sm:$0xff]
    %v583 = vld [vmem:[#allocation2 + $0x18] sm:$0xff]
    %v584 = vld [vmem:[#allocation2 + $0x20] sm:$0xff]
    %v585 = vld [vmem:[#allocation2 + $0x28] sm:$0xff]
    %v586 = vld [vmem:[#allocation2 + $0x30] sm:$0xff]
    %v587 = vld [vmem:[#allocation2 + $0x38] sm:$0xff]
    %v588 = vld [vmem:[#allocation2 + $0x40] sm:$0xff]
    %v589 = vld [vmem:[#allocation2 + $0x48] sm:$0xff]
    %v590 = vld [vmem:[#allocation2 + $0x50] sm:$0xff]
    %v591 = vld [vmem:[#allocation2 + $0x58] sm:$0xff]
    %v592 = vld [vmem:[#allocation2 + $0x60] sm:$0xff]
    %v593 = vld [vmem:[#allocation2 + $0x68] sm:$0xff]
    %v594 = vld [vmem:[#allocation2 + $0x70] sm:$0xff]
    %v595 = vld [vmem:[#allocation2 + $0x78] sm:$0xff]
    %v596 = vld [vmem:[#allocation2 + $0x80] sm:$0xff]
    %v597 = vld [vmem:[#allocation2 + $0x88] sm:$0xff]
    %v598 = vld [vmem:[#allocation2 + $0x90] sm:$0xff]
    %v599 = vld [vmem:[#allocation2 + $0x98] sm:$0xff]
    %v600 = vld [vmem:[#allocation2 + $0xa0] sm:$0xff]
    %v601 = vld [vmem:[#allocation2 + $0xa8] sm:$0xff]
    %v602 = vld [vmem:[#allocation2 + $0xb0] sm:$0xff]
    %v603 = vld [vmem:[#allocation2 + $0xb8] sm:$0xff]
    %v604 = vld [vmem:[#allocation2 + $0xc0] sm:$0xff]
    %v605 = vld [vmem:[#allocation2 + $0xc8] sm:$0xff]
    %v606 = vld [vmem:[#allocation2 + $0xd0] sm:$0xff]
    %v607 = vld [vmem:[#allocation2 + $0xd8] sm:$0xff]
    %v608 = vld [vmem:[#allocation2 + $0xe0] sm:$0xff]
    %v609 = vld [vmem:[#allocation2 + $0xe8] sm:$0xff]
    %v610 = vld [vmem:[#allocation2 + $0xf0] sm:$0xff]
    %v611 = vld [vmem:[#allocation2 + $0xf8] sm:$0xff]
    %v612 = vld [vmem:[#allocation2 + $0x100] sm:$0xff]
    %v613 = vld [vmem:[#allocation2 + $0x108] sm:$0xff]
    %v614 = vld [vmem:[#allocation2 + $0x110] sm:$0xff]
    %v615 = vld [vmem:[#allocation2 + $0x118] sm:$0xff]
    %v616 = vld [vmem:[#allocation2 + $0x120] sm:$0xff]
    %v617 = vld [vmem:[#allocation2 + $0x128] sm:$0xff]
    %v618 = vld [vmem:[#allocation2 + $0x130] sm:$0xff]
    %v619 = vld [vmem:[#allocation2 + $0x138] sm:$0xff]
    %v620 = vld [vmem:[#allocation2 + $0x140] sm:$0xff]
    %v621 = vld [vmem:[#allocation2 + $0x148] sm:$0xff]
    %v622 = vld [vmem:[#allocation2 + $0x150] sm:$0xff]
    %v623 = vld [vmem:[#allocation2 + $0x158] sm:$0xff]
    %v624 = vld [vmem:[#allocation2 + $0x160] sm:$0xff]
    %v625 = vld [vmem:[#allocation2 + $0x168] sm:$0xff]
    %v626 = vld [vmem:[#allocation2 + $0x170] sm:$0xff]
    %v627 = vld [vmem:[#allocation2 + $0x178] sm:$0xff]
    %v628 = vld [vmem:[#allocation2 + $0x180] sm:$0xff]
    %v629 = vld [vmem:[#allocation2 + $0x188] sm:$0xff]
    %v630 = vld [vmem:[#allocation2 + $0x190] sm:$0xff]
    %v631 = vld [vmem:[#allocation2 + $0x198] sm:$0xff]
    %v632 = vld [vmem:[#allocation2 + $0x1a0] sm:$0xff]
    %v633 = vld [vmem:[#allocation2 + $0x1a8] sm:$0xff]
    %v634 = vld [vmem:[#allocation2 + $0x1b0] sm:$0xff]
    %v635 = vld [vmem:[#allocation2 + $0x1b8] sm:$0xff]
    %v636 = vld [vmem:[#allocation2 + $0x1c0] sm:$0xff]
    %v637 = vld [vmem:[#allocation2 + $0x1c8] sm:$0xff]
    %v638 = vld [vmem:[#allocation2 + $0x1d0] sm:$0xff]
    %v639 = vld [vmem:[#allocation2 + $0x1d8] sm:$0xff]
    %v640 = vld [vmem:[#allocation2 + $0x1e0] sm:$0xff]
    %v641 = vld [vmem:[#allocation2 + $0x1e8] sm:$0xff]
    %v642 = vld [vmem:[#allocation2 + $0x1f0] sm:$0xff]
    %v643 = vld [vmem:[#allocation2 + $0x1f8] sm:$0xff]
    %v644 = vld [vmem:[#allocation2 + $0x200] sm:$0xff]
    %v645 = vld [vmem:[#allocation2 + $0x208] sm:$0xff]
    %v646 = vld [vmem:[#allocation2 + $0x210] sm:$0xff]
    %v647 = vld [vmem:[#allocation2 + $0x218] sm:$0xff]
    %v648 = vld [vmem:[#allocation2 + $0x220] sm:$0xff]
    %v649 = vld [vmem:[#allocation2 + $0x228] sm:$0xff]
    %v650 = vld [vmem:[#allocation2 + $0x230] sm:$0xff]
    %v651 = vld [vmem:[#allocation2 + $0x238] sm:$0xff]
    %v652 = vld [vmem:[#allocation2 + $0x240] sm:$0xff]
    %v653 = vld [vmem:[#allocation2 + $0x248] sm:$0xff]
    %v654 = vld [vmem:[#allocation2 + $0x250] sm:$0xff]
    %v655 = vld [vmem:[#allocation2 + $0x258] sm:$0xff]
    %v656 = vld [vmem:[#allocation2 + $0x260] sm:$0xff]
    %v657 = vld [vmem:[#allocation2 + $0x268] sm:$0xff]
    %v658 = vld [vmem:[#allocation2 + $0x270] sm:$0xff]
    %v659 = vld [vmem:[#allocation2 + $0x278] sm:$0xff]
    %v660 = vld [vmem:[#allocation2 + $0x280] sm:$0xff]
    %v661 = vld [vmem:[#allocation2 + $0x288] sm:$0xff]
    %v662 = vld [vmem:[#allocation2 + $0x290] sm:$0xff]
    %v663 = vld [vmem:[#allocation2 + $0x298] sm:$0xff]
    %v664 = vld [vmem:[#allocation2 + $0x2a0] sm:$0xff]
    %v665 = vld [vmem:[#allocation2 + $0x2a8] sm:$0xff]
    %v666 = vld [vmem:[#allocation2 + $0x2b0] sm:$0xff]
    %v667 = vld [vmem:[#allocation2 + $0x2b8] sm:$0xff]
    %v668 = vld [vmem:[#allocation2 + $0x2c0] sm:$0xff]
    %v669 = vld [vmem:[#allocation2 + $0x2c8] sm:$0xff]
    %v670 = vld [vmem:[#allocation2 + $0x2d0] sm:$0xff]
    %v671 = vld [vmem:[#allocation2 + $0x2d8] sm:$0xff]
    %v672 = vld [vmem:[#allocation2 + $0x2e0] sm:$0xff]
    %v673 = vld [vmem:[#allocation2 + $0x2e8] sm:$0xff]
    %v674 = vld [vmem:[#allocation2 + $0x2f0] sm:$0xff]
    %v675 = vld [vmem:[#allocation2 + $0x2f8] sm:$0xff]
    %v676 = vld [vmem:[#allocation2 + $0x300] sm:$0xff]
    %v677 = vld [vmem:[#allocation2 + $0x308] sm:$0xff]
    %v678 = vld [vmem:[#allocation2 + $0x310] sm:$0xff]
    %v679 = vld [vmem:[#allocation2 + $0x318] sm:$0xff]
    %v680 = vld [vmem:[#allocation2 + $0x320] sm:$0xff]
    %v681 = vld [vmem:[#allocation2 + $0x328] sm:$0xff]
    %v682 = vld [vmem:[#allocation2 + $0x330] sm:$0xff]
    %v683 = vld [vmem:[#allocation2 + $0x338] sm:$0xff]
    %v684 = vld [vmem:[#allocation2 + $0x340] sm:$0xff]
    %v685 = vld [vmem:[#allocation2 + $0x348] sm:$0xff]
    %v686 = vld [vmem:[#allocation2 + $0x350] sm:$0xff]
    %v687 = vld [vmem:[#allocation2 + $0x358] sm:$0xff]
    %v688 = vld [vmem:[#allocation2 + $0x360] sm:$0xff]
    %v689 = vld [vmem:[#allocation2 + $0x368] sm:$0xff]
    %v690 = vld [vmem:[#allocation2 + $0x370] sm:$0xff]
    %v691 = vld [vmem:[#allocation2 + $0x378] sm:$0xff]
    %v692 = vld [vmem:[#allocation2 + $0x380] sm:$0xff]
    %v693 = vld [vmem:[#allocation2 + $0x388] sm:$0xff]
    %v694 = vld [vmem:[#allocation2 + $0x390] sm:$0xff]
    %v695 = vld [vmem:[#allocation2 + $0x398] sm:$0xff]
    %v696 = vld [vmem:[#allocation2 + $0x3a0] sm:$0xff]
    %v697 = vld [vmem:[#allocation2 + $0x3a8] sm:$0xff]
    %v698 = vld [vmem:[#allocation2 + $0x3b0] sm:$0xff]
    %v699 = vld [vmem:[#allocation2 + $0x3b8] sm:$0xff]
    %v700 = vld [vmem:[#allocation2 + $0x3c0] sm:$0xff]
    %v701 = vld [vmem:[#allocation2 + $0x3c8] sm:$0xff]
    %v702 = vld [vmem:[#allocation2 + $0x3d0] sm:$0xff]
    %v703 = vld [vmem:[#allocation2 + $0x3d8] sm:$0xff]
    %v704 = vld [vmem:[#allocation2 + $0x3e0] sm:$0xff]
    %v705 = vld [vmem:[#allocation2 + $0x3e8] sm:$0xff]
    %v706 = vld [vmem:[#allocation2 + $0x3f0] sm:$0xff]
    %v707 = vld [vmem:[#allocation2 + $0x3f8] sm:$0xff]
    %v710 = vlaneseq
    %v711 = vshrl.u32 %v710, 7
    %v712 = vsub.s32 0, %v711
    %v713 = vrot.slane %v68, %v712
    %v714 = vlaneseq
    %v715 = vshrl.u32 %v714, 7
    %v716 = vsub.s32 4, %v715
    %v717 = vrot.slane %v68, %v716
    %v718 = vlaneseq
    %v719 = vshrl.u32 %v718, 7
    %v720 = vsub.s32 0, %v719
    %v721 = vrot.slane %v69, %v720
    %v722 = vlaneseq
    %v723 = vshrl.u32 %v722, 7
    %v724 = vsub.s32 4, %v723
    %v725 = vrot.slane %v69, %v724
    %v730 = vlaneseq
    %v731 = vshrl.u32 %v730, 7
    %v732 = vsub.s32 0, %v731
    %v733 = vrot.slane %v713, %v732
    %v734 = vlaneseq
    %v735 = vshrl.u32 %v734, 7
    %v736 = vsub.s32 0, %v735
    %v737 = vrot.slane %v717, %v736
    %v738 = vlaneseq
    %v739 = vshrl.u32 %v738, 7
    %v740 = vsub.s32 0, %v739
    %v741 = vrot.slane %v721, %v740
    %v742 = vlaneseq
    %v743 = vshrl.u32 %v742, 7
    %v744 = vsub.s32 0, %v743
    %v745 = vrot.slane %v725, %v744
    %v874 = vunpack.c.l.b16 %v580
    %v875 = vunpack.c.h.b16 %v580
    %v876 = vunpack.c.l.b16 %v581
    %v877 = vunpack.c.h.b16 %v581
    %v878 = vunpack.c.l.b16 %v582
    %v879 = vunpack.c.h.b16 %v582
    %v880 = vunpack.c.l.b16 %v583
    %v881 = vunpack.c.h.b16 %v583
    %v882 = vunpack.c.l.b16 %v584
    %v883 = vunpack.c.h.b16 %v584
    %v884 = vunpack.c.l.b16 %v585
    %v885 = vunpack.c.h.b16 %v585
    %v886 = vunpack.c.l.b16 %v586
    %v887 = vunpack.c.h.b16 %v586
    %v888 = vunpack.c.l.b16 %v587
    %v889 = vunpack.c.h.b16 %v587
    %v890 = vunpack.c.l.b16 %v588
    %v891 = vunpack.c.h.b16 %v588
    %v892 = vunpack.c.l.b16 %v589
    %v893 = vunpack.c.h.b16 %v589
    %v894 = vunpack.c.l.b16 %v590
    %v895 = vunpack.c.h.b16 %v590
    %v896 = vunpack.c.l.b16 %v591
    %v897 = vunpack.c.h.b16 %v591
    %v898 = vunpack.c.l.b16 %v592
    %v899 = vunpack.c.h.b16 %v592
    %v900 = vunpack.c.l.b16 %v593
    %v901 = vunpack.c.h.b16 %v593
    %v902 = vunpack.c.l.b16 %v594
    %v903 = vunpack.c.h.b16 %v594
    %v904 = vunpack.c.l.b16 %v595
    %v905 = vunpack.c.h.b16 %v595
    %v906 = vunpack.c.l.b16 %v596
    %v907 = vunpack.c.h.b16 %v596
    %v908 = vunpack.c.l.b16 %v597
    %v909 = vunpack.c.h.b16 %v597
    %v910 = vunpack.c.l.b16 %v598
    %v911 = vunpack.c.h.b16 %v598
    %v912 = vunpack.c.l.b16 %v599
    %v913 = vunpack.c.h.b16 %v599
    %v914 = vunpack.c.l.b16 %v600
    %v915 = vunpack.c.h.b16 %v600
    %v916 = vunpack.c.l.b16 %v601
    %v917 = vunpack.c.h.b16 %v601
    %v918 = vunpack.c.l.b16 %v602
    %v919 = vunpack.c.h.b16 %v602
    %v920 = vunpack.c.l.b16 %v603
    %v921 = vunpack.c.h.b16 %v603
    %v922 = vunpack.c.l.b16 %v604
    %v923 = vunpack.c.h.b16 %v604
    %v924 = vunpack.c.l.b16 %v605
    %v925 = vunpack.c.h.b16 %v605
    %v926 = vunpack.c.l.b16 %v606
    %v927 = vunpack.c.h.b16 %v606
    %v928 = vunpack.c.l.b16 %v607
    %v929 = vunpack.c.h.b16 %v607
    %v930 = vunpack.c.l.b16 %v608
    %v931 = vunpack.c.h.b16 %v608
    %v932 = vunpack.c.l.b16 %v609
    %v933 = vunpack.c.h.b16 %v609
    %v934 = vunpack.c.l.b16 %v610
    %v935 = vunpack.c.h.b16 %v610
    %v936 = vunpack.c.l.b16 %v611
    %v937 = vunpack.c.h.b16 %v611
    %v938 = vunpack.c.l.b16 %v612
    %v939 = vunpack.c.h.b16 %v612
    %v940 = vunpack.c.l.b16 %v613
    %v941 = vunpack.c.h.b16 %v613
    %v942 = vunpack.c.l.b16 %v614
    %v943 = vunpack.c.h.b16 %v614
    %v944 = vunpack.c.l.b16 %v615
    %v945 = vunpack.c.h.b16 %v615
    %v946 = vunpack.c.l.b16 %v616
    %v947 = vunpack.c.h.b16 %v616
    %v948 = vunpack.c.l.b16 %v617
    %v949 = vunpack.c.h.b16 %v617
    %v950 = vunpack.c.l.b16 %v618
    %v951 = vunpack.c.h.b16 %v618
    %v952 = vunpack.c.l.b16 %v619
    %v953 = vunpack.c.h.b16 %v619
    %v954 = vunpack.c.l.b16 %v620
    %v955 = vunpack.c.h.b16 %v620
    %v956 = vunpack.c.l.b16 %v621
    %v957 = vunpack.c.h.b16 %v621
    %v958 = vunpack.c.l.b16 %v622
    %v959 = vunpack.c.h.b16 %v622
    %v960 = vunpack.c.l.b16 %v623
    %v961 = vunpack.c.h.b16 %v623
    %v962 = vunpack.c.l.b16 %v624
    %v963 = vunpack.c.h.b16 %v624
    %v964 = vunpack.c.l.b16 %v625
    %v965 = vunpack.c.h.b16 %v625
    %v966 = vunpack.c.l.b16 %v626
    %v967 = vunpack.c.h.b16 %v626
    %v968 = vunpack.c.l.b16 %v627
    %v969 = vunpack.c.h.b16 %v627
    %v970 = vunpack.c.l.b16 %v628
    %v971 = vunpack.c.h.b16 %v628
    %v972 = vunpack.c.l.b16 %v629
    %v973 = vunpack.c.h.b16 %v629
    %v974 = vunpack.c.l.b16 %v630
    %v975 = vunpack.c.h.b16 %v630
    %v976 = vunpack.c.l.b16 %v631
    %v977 = vunpack.c.h.b16 %v631
    %v978 = vunpack.c.l.b16 %v632
    %v979 = vunpack.c.h.b16 %v632
    %v980 = vunpack.c.l.b16 %v633
    %v981 = vunpack.c.h.b16 %v633
    %v982 = vunpack.c.l.b16 %v634
    %v983 = vunpack.c.h.b16 %v634
    %v984 = vunpack.c.l.b16 %v635
    %v985 = vunpack.c.h.b16 %v635
    %v986 = vunpack.c.l.b16 %v636
    %v987 = vunpack.c.h.b16 %v636
    %v988 = vunpack.c.l.b16 %v637
    %v989 = vunpack.c.h.b16 %v637
    %v990 = vunpack.c.l.b16 %v638
    %v991 = vunpack.c.h.b16 %v638
    %v992 = vunpack.c.l.b16 %v639
    %v993 = vunpack.c.h.b16 %v639
    %v994 = vunpack.c.l.b16 %v640
    %v995 = vunpack.c.h.b16 %v640
    %v996 = vunpack.c.l.b16 %v641
    %v997 = vunpack.c.h.b16 %v641
    %v998 = vunpack.c.l.b16 %v642
    %v999 = vunpack.c.h.b16 %v642
    %v1000 = vunpack.c.l.b16 %v643
    %v1001 = vunpack.c.h.b16 %v643
    %v1002 = vunpack.c.l.b16 %v644
    %v1003 = vunpack.c.h.b16 %v644
    %v1004 = vunpack.c.l.b16 %v645
    %v1005 = vunpack.c.h.b16 %v645
    %v1006 = vunpack.c.l.b16 %v646
    %v1007 = vunpack.c.h.b16 %v646
    %v1008 = vunpack.c.l.b16 %v647
    %v1009 = vunpack.c.h.b16 %v647
    %v1010 = vunpack.c.l.b16 %v648
    %v1011 = vunpack.c.h.b16 %v648
    %v1012 = vunpack.c.l.b16 %v649
    %v1013 = vunpack.c.h.b16 %v649
    %v1014 = vunpack.c.l.b16 %v650
    %v1015 = vunpack.c.h.b16 %v650
    %v1016 = vunpack.c.l.b16 %v651
    %v1017 = vunpack.c.h.b16 %v651
    %v1018 = vunpack.c.l.b16 %v652
    %v1019 = vunpack.c.h.b16 %v652
    %v1020 = vunpack.c.l.b16 %v653
    %v1021 = vunpack.c.h.b16 %v653
    %v1022 = vunpack.c.l.b16 %v654
    %v1023 = vunpack.c.h.b16 %v654
    %v1024 = vunpack.c.l.b16 %v655
    %v1025 = vunpack.c.h.b16 %v655
    %v1026 = vunpack.c.l.b16 %v656
    %v1027 = vunpack.c.h.b16 %v656
    %v1028 = vunpack.c.l.b16 %v657
    %v1029 = vunpack.c.h.b16 %v657
    %v1030 = vunpack.c.l.b16 %v658
    %v1031 = vunpack.c.h.b16 %v658
    %v1032 = vunpack.c.l.b16 %v659
    %v1033 = vunpack.c.h.b16 %v659
    %v1034 = vunpack.c.l.b16 %v660
    %v1035 = vunpack.c.h.b16 %v660
    %v1036 = vunpack.c.l.b16 %v661
    %v1037 = vunpack.c.h.b16 %v661
    %v1038 = vunpack.c.l.b16 %v662
    %v1039 = vunpack.c.h.b16 %v662
    %v1040 = vunpack.c.l.b16 %v663
    %v1041 = vunpack.c.h.b16 %v663
    %v1042 = vunpack.c.l.b16 %v664
    %v1043 = vunpack.c.h.b16 %v664
    %v1044 = vunpack.c.l.b16 %v665
    %v1045 = vunpack.c.h.b16 %v665
    %v1046 = vunpack.c.l.b16 %v666
    %v1047 = vunpack.c.h.b16 %v666
    %v1048 = vunpack.c.l.b16 %v667
    %v1049 = vunpack.c.h.b16 %v667
    %v1050 = vunpack.c.l.b16 %v668
    %v1051 = vunpack.c.h.b16 %v668
    %v1052 = vunpack.c.l.b16 %v669
    %v1053 = vunpack.c.h.b16 %v669
    %v1054 = vunpack.c.l.b16 %v670
    %v1055 = vunpack.c.h.b16 %v670
    %v1056 = vunpack.c.l.b16 %v671
    %v1057 = vunpack.c.h.b16 %v671
    %v1058 = vunpack.c.l.b16 %v672
    %v1059 = vunpack.c.h.b16 %v672
    %v1060 = vunpack.c.l.b16 %v673
    %v1061 = vunpack.c.h.b16 %v673
    %v1062 = vunpack.c.l.b16 %v674
    %v1063 = vunpack.c.h.b16 %v674
    %v1064 = vunpack.c.l.b16 %v675
    %v1065 = vunpack.c.h.b16 %v675
    %v1066 = vunpack.c.l.b16 %v676
    %v1067 = vunpack.c.h.b16 %v676
    %v1068 = vunpack.c.l.b16 %v677
    %v1069 = vunpack.c.h.b16 %v677
    %v1070 = vunpack.c.l.b16 %v678
    %v1071 = vunpack.c.h.b16 %v678
    %v1072 = vunpack.c.l.b16 %v679
    %v1073 = vunpack.c.h.b16 %v679
    %v1074 = vunpack.c.l.b16 %v680
    %v1075 = vunpack.c.h.b16 %v680
    %v1076 = vunpack.c.l.b16 %v681
    %v1077 = vunpack.c.h.b16 %v681
    %v1078 = vunpack.c.l.b16 %v682
    %v1079 = vunpack.c.h.b16 %v682
    %v1080 = vunpack.c.l.b16 %v683
    %v1081 = vunpack.c.h.b16 %v683
    %v1082 = vunpack.c.l.b16 %v684
    %v1083 = vunpack.c.h.b16 %v684
    %v1084 = vunpack.c.l.b16 %v685
    %v1085 = vunpack.c.h.b16 %v685
    %v1086 = vunpack.c.l.b16 %v686
    %v1087 = vunpack.c.h.b16 %v686
    %v1088 = vunpack.c.l.b16 %v687
    %v1089 = vunpack.c.h.b16 %v687
    %v1090 = vunpack.c.l.b16 %v688
    %v1091 = vunpack.c.h.b16 %v688
    %v1092 = vunpack.c.l.b16 %v689
    %v1093 = vunpack.c.h.b16 %v689
    %v1094 = vunpack.c.l.b16 %v690
    %v1095 = vunpack.c.h.b16 %v690
    %v1096 = vunpack.c.l.b16 %v691
    %v1097 = vunpack.c.h.b16 %v691
    %v1098 = vunpack.c.l.b16 %v692
    %v1099 = vunpack.c.h.b16 %v692
    %v1100 = vunpack.c.l.b16 %v693
    %v1101 = vunpack.c.h.b16 %v693
    %v1102 = vunpack.c.l.b16 %v694
    %v1103 = vunpack.c.h.b16 %v694
    %v1104 = vunpack.c.l.b16 %v695
    %v1105 = vunpack.c.h.b16 %v695
    %v1106 = vunpack.c.l.b16 %v696
    %v1107 = vunpack.c.h.b16 %v696
    %v1108 = vunpack.c.l.b16 %v697
    %v1109 = vunpack.c.h.b16 %v697
    %v1110 = vunpack.c.l.b16 %v698
    %v1111 = vunpack.c.h.b16 %v698
    %v1112 = vunpack.c.l.b16 %v699
    %v1113 = vunpack.c.h.b16 %v699
    %v1114 = vunpack.c.l.b16 %v700
    %v1115 = vunpack.c.h.b16 %v700
    %v1116 = vunpack.c.l.b16 %v701
    %v1117 = vunpack.c.h.b16 %v701
    %v1118 = vunpack.c.l.b16 %v702
    %v1119 = vunpack.c.h.b16 %v702
    %v1120 = vunpack.c.l.b16 %v703
    %v1121 = vunpack.c.h.b16 %v703
    %v1122 = vunpack.c.l.b16 %v704
    %v1123 = vunpack.c.h.b16 %v704
    %v1124 = vunpack.c.l.b16 %v705
    %v1125 = vunpack.c.h.b16 %v705
    %v1126 = vunpack.c.l.b16 %v706
    %v1127 = vunpack.c.h.b16 %v706
    %v1128 = vunpack.c.l.b16 %v707
    %v1129 = vunpack.c.h.b16 %v707
    %v1130 = vpack.c.b16 %v878, %v874
    %v1131 = vpack.c.b16 %v879, %v875
    %v1132 = vpack.c.b16 %v880, %v876
    %v1133 = vpack.c.b16 %v881, %v877
    %v1134 = vpack.c.b16 %v886, %v882
    %v1135 = vpack.c.b16 %v887, %v883
    %v1136 = vpack.c.b16 %v888, %v884
    %v1137 = vpack.c.b16 %v889, %v885
    %v1138 = vpack.c.b16 %v894, %v890
    %v1139 = vpack.c.b16 %v895, %v891
    %v1140 = vpack.c.b16 %v896, %v892
    %v1141 = vpack.c.b16 %v897, %v893
    %v1142 = vpack.c.b16 %v902, %v898
    %v1143 = vpack.c.b16 %v903, %v899
    %v1144 = vpack.c.b16 %v904, %v900
    %v1145 = vpack.c.b16 %v905, %v901
    %v1146 = vpack.c.b16 %v910, %v906
    %v1147 = vpack.c.b16 %v911, %v907
    %v1148 = vpack.c.b16 %v912, %v908
    %v1149 = vpack.c.b16 %v913, %v909
    %v1150 = vpack.c.b16 %v918, %v914
    %v1151 = vpack.c.b16 %v919, %v915
    %v1152 = vpack.c.b16 %v920, %v916
    %v1153 = vpack.c.b16 %v921, %v917
    %v1154 = vpack.c.b16 %v926, %v922
    %v1155 = vpack.c.b16 %v927, %v923
    %v1156 = vpack.c.b16 %v928, %v924
    %v1157 = vpack.c.b16 %v929, %v925
    %v1158 = vpack.c.b16 %v934, %v930
    %v1159 = vpack.c.b16 %v935, %v931
    %v1160 = vpack.c.b16 %v936, %v932
    %v1161 = vpack.c.b16 %v937, %v933
    %v1162 = vpack.c.b16 %v942, %v938
    %v1163 = vpack.c.b16 %v943, %v939
    %v1164 = vpack.c.b16 %v944, %v940
    %v1165 = vpack.c.b16 %v945, %v941
    %v1166 = vpack.c.b16 %v950, %v946
    %v1167 = vpack.c.b16 %v951, %v947
    %v1168 = vpack.c.b16 %v952, %v948
    %v1169 = vpack.c.b16 %v953, %v949
    %v1170 = vpack.c.b16 %v958, %v954
    %v1171 = vpack.c.b16 %v959, %v955
    %v1172 = vpack.c.b16 %v960, %v956
    %v1173 = vpack.c.b16 %v961, %v957
    %v1174 = vpack.c.b16 %v966, %v962
    %v1175 = vpack.c.b16 %v967, %v963
    %v1176 = vpack.c.b16 %v968, %v964
    %v1177 = vpack.c.b16 %v969, %v965
    %v1178 = vpack.c.b16 %v974, %v970
    %v1179 = vpack.c.b16 %v975, %v971
    %v1180 = vpack.c.b16 %v976, %v972
    %v1181 = vpack.c.b16 %v977, %v973
    %v1182 = vpack.c.b16 %v982, %v978
    %v1183 = vpack.c.b16 %v983, %v979
    %v1184 = vpack.c.b16 %v984, %v980
    %v1185 = vpack.c.b16 %v985, %v981
    %v1186 = vpack.c.b16 %v990, %v986
    %v1187 = vpack.c.b16 %v991, %v987
    %v1188 = vpack.c.b16 %v992, %v988
    %v1189 = vpack.c.b16 %v993, %v989
    %v1190 = vpack.c.b16 %v998, %v994
    %v1191 = vpack.c.b16 %v999, %v995
    %v1192 = vpack.c.b16 %v1000, %v996
    %v1193 = vpack.c.b16 %v1001, %v997
    %v1194 = vpack.c.b16 %v1006, %v1002
    %v1195 = vpack.c.b16 %v1007, %v1003
    %v1196 = vpack.c.b16 %v1008, %v1004
    %v1197 = vpack.c.b16 %v1009, %v1005
    %v1198 = vpack.c.b16 %v1014, %v1010
    %v1199 = vpack.c.b16 %v1015, %v1011
    %v1200 = vpack.c.b16 %v1016, %v1012
    %v1201 = vpack.c.b16 %v1017, %v1013
    %v1202 = vpack.c.b16 %v1022, %v1018
    %v1203 = vpack.c.b16 %v1023, %v1019
    %v1204 = vpack.c.b16 %v1024, %v1020
    %v1205 = vpack.c.b16 %v1025, %v1021
    %v1206 = vpack.c.b16 %v1030, %v1026
    %v1207 = vpack.c.b16 %v1031, %v1027
    %v1208 = vpack.c.b16 %v1032, %v1028
    %v1209 = vpack.c.b16 %v1033, %v1029
    %v1210 = vpack.c.b16 %v1038, %v1034
    %v1211 = vpack.c.b16 %v1039, %v1035
    %v1212 = vpack.c.b16 %v1040, %v1036
    %v1213 = vpack.c.b16 %v1041, %v1037
    %v1214 = vpack.c.b16 %v1046, %v1042
    %v1215 = vpack.c.b16 %v1047, %v1043
    %v1216 = vpack.c.b16 %v1048, %v1044
    %v1217 = vpack.c.b16 %v1049, %v1045
    %v1218 = vpack.c.b16 %v1054, %v1050
    %v1219 = vpack.c.b16 %v1055, %v1051
    %v1220 = vpack.c.b16 %v1056, %v1052
    %v1221 = vpack.c.b16 %v1057, %v1053
    %v1222 = vpack.c.b16 %v1062, %v1058
    %v1223 = vpack.c.b16 %v1063, %v1059
    %v1224 = vpack.c.b16 %v1064, %v1060
    %v1225 = vpack.c.b16 %v1065, %v1061
    %v1226 = vpack.c.b16 %v1070, %v1066
    %v1227 = vpack.c.b16 %v1071, %v1067
    %v1228 = vpack.c.b16 %v1072, %v1068
    %v1229 = vpack.c.b16 %v1073, %v1069
    %v1230 = vpack.c.b16 %v1078, %v1074
    %v1231 = vpack.c.b16 %v1079, %v1075
    %v1232 = vpack.c.b16 %v1080, %v1076
    %v1233 = vpack.c.b16 %v1081, %v1077
    %v1234 = vpack.c.b16 %v1086, %v1082
    %v1235 = vpack.c.b16 %v1087, %v1083
    %v1236 = vpack.c.b16 %v1088, %v1084
    %v1237 = vpack.c.b16 %v1089, %v1085
    %v1238 = vpack.c.b16 %v1094, %v1090
    %v1239 = vpack.c.b16 %v1095, %v1091
    %v1240 = vpack.c.b16 %v1096, %v1092
    %v1241 = vpack.c.b16 %v1097, %v1093
    %v1242 = vpack.c.b16 %v1102, %v1098
    %v1243 = vpack.c.b16 %v1103, %v1099
    %v1244 = vpack.c.b16 %v1104, %v1100
    %v1245 = vpack.c.b16 %v1105, %v1101
    %v1246 = vpack.c.b16 %v1110, %v1106
    %v1247 = vpack.c.b16 %v1111, %v1107
    %v1248 = vpack.c.b16 %v1112, %v1108
    %v1249 = vpack.c.b16 %v1113, %v1109
    %v1250 = vpack.c.b16 %v1118, %v1114
    %v1251 = vpack.c.b16 %v1119, %v1115
    %v1252 = vpack.c.b16 %v1120, %v1116
    %v1253 = vpack.c.b16 %v1121, %v1117
    %v1254 = vpack.c.b16 %v1126, %v1122
    %v1255 = vpack.c.b16 %v1127, %v1123
    %v1256 = vpack.c.b16 %v1128, %v1124
    %v1257 = vpack.c.b16 %v1129, %v1125
    %1386 = vmatprep.subr.bf16.mxu0 %v1131
    %1387 = vmatpush1.bf16.msra.mxu0 %v1130
    %1388 = vmatprep.subr.bf16.mxu0 %v1135
    %1389 = vmatpush1.bf16.msra.mxu0 %v1134
    %1390 = vmatprep.subr.bf16.mxu0 %v1139
    %1391 = vmatpush1.bf16.msra.mxu0 %v1138
    %1392 = vmatprep.subr.bf16.mxu0 %v1143
    %1393 = vmatpush1.bf16.msra.mxu0 %v1142
    %1394 = vmatprep.subr.bf16.mxu0 %v1147
    %1395 = vmatpush1.bf16.msra.mxu0 %v1146
    %1396 = vmatprep.subr.bf16.mxu0 %v1151
    %1397 = vmatpush1.bf16.msra.mxu0 %v1150
    %1398 = vmatprep.subr.bf16.mxu0 %v1155
    %1399 = vmatpush1.bf16.msra.mxu0 %v1154
    %1400 = vmatprep.subr.bf16.mxu0 %v1159
    %1401 = vmatpush1.bf16.msra.mxu0 %v1158
    %1402 = vmatprep.subr.bf16.mxu0 %v1163
    %1403 = vmatpush1.bf16.msra.mxu0 %v1162
    %1404 = vmatprep.subr.bf16.mxu0 %v1167
    %1405 = vmatpush1.bf16.msra.mxu0 %v1166
    %1406 = vmatprep.subr.bf16.mxu0 %v1171
    %1407 = vmatpush1.bf16.msra.mxu0 %v1170
    %1408 = vmatprep.subr.bf16.mxu0 %v1175
    %1409 = vmatpush1.bf16.msra.mxu0 %v1174
    %1410 = vmatprep.subr.bf16.mxu0 %v1179
    %1411 = vmatpush1.bf16.msra.mxu0 %v1178
    %1412 = vmatprep.subr.bf16.mxu0 %v1183
    %1413 = vmatpush1.bf16.msra.mxu0 %v1182
    %1414 = vmatprep.subr.bf16.mxu0 %v1187
    %1415 = vmatpush1.bf16.msra.mxu0 %v1186
    %1416 = vmatprep.subr.bf16.mxu0 %v1191
    %1417 = vmatpush1.bf16.msra.mxu0 %v1190
    %1418 = vmatprep.mubr.bf16.mxu0 %v577
    %1419 = vmatmul.mubr.bf16.gmra.mrb[0].mxu0 %v576
    %v1420 = vpop.f32.mrb[0].mxu0
    %v1421 = vadd.f32 %v733, %v1420
    %v1422 = vpop.f32.mrb[0].mxu0
    %v1423 = vadd.f32 %v737, %v1422
    %v1424 = vpop.f32.mrb[0].mxu0
    %v1425 = vadd.f32 %v733, %v1424
    %v1426 = vpop.f32.mrb[0].mxu0
    %v1427 = vadd.f32 %v737, %v1426
    %1428 = vdwg.mxu0
    %1429 = vmatprep.subr.bf16.mxu0 %v1195
    %1430 = vmatpush1.bf16.msra.mxu0 %v1194
    %1431 = vmatprep.subr.bf16.mxu0 %v1199
    %1432 = vmatpush1.bf16.msra.mxu0 %v1198
    %1433 = vmatprep.subr.bf16.mxu0 %v1203
    %1434 = vmatpush1.bf16.msra.mxu0 %v1202
    %1435 = vmatprep.subr.bf16.mxu0 %v1207
    %1436 = vmatpush1.bf16.msra.mxu0 %v1206
    %1437 = vmatprep.subr.bf16.mxu0 %v1211
    %1438 = vmatpush1.bf16.msra.mxu0 %v1210
    %1439 = vmatprep.subr.bf16.mxu0 %v1215
    %1440 = vmatpush1.bf16.msra.mxu0 %v1214
    %1441 = vmatprep.subr.bf16.mxu0 %v1219
    %1442 = vmatpush1.bf16.msra.mxu0 %v1218
    %1443 = vmatprep.subr.bf16.mxu0 %v1223
    %1444 = vmatpush1.bf16.msra.mxu0 %v1222
    %1445 = vmatprep.subr.bf16.mxu0 %v1227
    %1446 = vmatpush1.bf16.msra.mxu0 %v1226
    %1447 = vmatprep.subr.bf16.mxu0 %v1231
    %1448 = vmatpush1.bf16.msra.mxu0 %v1230
    %1449 = vmatprep.subr.bf16.mxu0 %v1235
    %1450 = vmatpush1.bf16.msra.mxu0 %v1234
    %1451 = vmatprep.subr.bf16.mxu0 %v1239
    %1452 = vmatpush1.bf16.msra.mxu0 %v1238
    %1453 = vmatprep.subr.bf16.mxu0 %v1243
    %1454 = vmatpush1.bf16.msra.mxu0 %v1242
    %1455 = vmatprep.subr.bf16.mxu0 %v1247
    %1456 = vmatpush1.bf16.msra.mxu0 %v1246
    %1457 = vmatprep.subr.bf16.mxu0 %v1251
    %1458 = vmatpush1.bf16.msra.mxu0 %v1250
    %1459 = vmatprep.subr.bf16.mxu0 %v1255
    %1460 = vmatpush1.bf16.msra.mxu0 %v1254
    %1461 = vmatprep.mubr.bf16.mxu0 %v579
    %1462 = vmatmul.mubr.bf16.gmra.mrb[0].mxu0 %v578
    %v1463 = vpop.f32.mrb[0].mxu0
    %v1464 = vadd.f32 %v1421, %v1463
    %v1465 = vpop.f32.mrb[0].mxu0
    %v1466 = vadd.f32 %v1423, %v1465
    %v1467 = vpop.f32.mrb[0].mxu0
    %v1468 = vadd.f32 %v1425, %v1467
    %v1469 = vpop.f32.mrb[0].mxu0
    %v1470 = vadd.f32 %v1427, %v1469
    %1471 = vdwg.mxu0
    %1472 = vmatprep.subr.bf16.mxu0 %v1133
    %1473 = vmatpush1.bf16.msra.mxu0 %v1132
    %1474 = vmatprep.subr.bf16.mxu0 %v1137
    %1475 = vmatpush1.bf16.msra.mxu0 %v1136
    %1476 = vmatprep.subr.bf16.mxu0 %v1141
    %1477 = vmatpush1.bf16.msra.mxu0 %v1140
    %1478 = vmatprep.subr.bf16.mxu0 %v1145
    %1479 = vmatpush1.bf16.msra.mxu0 %v1144
    %1480 = vmatprep.subr.bf16.mxu0 %v1149
    %1481 = vmatpush1.bf16.msra.mxu0 %v1148
    %1482 = vmatprep.subr.bf16.mxu0 %v1153
    %1483 = vmatpush1.bf16.msra.mxu0 %v1152
    %1484 = vmatprep.subr.bf16.mxu0 %v1157
    %1485 = vmatpush1.bf16.msra.mxu0 %v1156
    %1486 = vmatprep.subr.bf16.mxu0 %v1161
    %1487 = vmatpush1.bf16.msra.mxu0 %v1160
    %1488 = vmatprep.subr.bf16.mxu0 %v1165
    %1489 = vmatpush1.bf16.msra.mxu0 %v1164
    %1490 = vmatprep.subr.bf16.mxu0 %v1169
    %1491 = vmatpush1.bf16.msra.mxu0 %v1168
    %1492 = vmatprep.subr.bf16.mxu0 %v1173
    %1493 = vmatpush1.bf16.msra.mxu0 %v1172
    %1494 = vmatprep.subr.bf16.mxu0 %v1177
    %1495 = vmatpush1.bf16.msra.mxu0 %v1176
    %1496 = vmatprep.subr.bf16.mxu0 %v1181
    %1497 = vmatpush1.bf16.msra.mxu0 %v1180
    %1498 = vmatprep.subr.bf16.mxu0 %v1185
    %1499 = vmatpush1.bf16.msra.mxu0 %v1184
    %1500 = vmatprep.subr.bf16.mxu0 %v1189
    %1501 = vmatpush1.bf16.msra.mxu0 %v1188
    %1502 = vmatprep.subr.bf16.mxu0 %v1193
    %1503 = vmatpush1.bf16.msra.mxu0 %v1192
    %1504 = vmatprep.mubr.bf16.mxu0 %v577
    %1505 = vmatmul.mubr.bf16.gmra.mrb[0].mxu0 %v576
    %v1506 = vpop.f32.mrb[0].mxu0
    %v1507 = vadd.f32 %v741, %v1506
    %v1508 = vpop.f32.mrb[0].mxu0
    %v1509 = vadd.f32 %v745, %v1508
    %v1510 = vpop.f32.mrb[0].mxu0
    %v1511 = vadd.f32 %v741, %v1510
    %v1512 = vpop.f32.mrb[0].mxu0
    %v1513 = vadd.f32 %v745, %v1512
    %1514 = vdwg.mxu0
    %1515 = vmatprep.subr.bf16.mxu0 %v1197
    %1516 = vmatpush1.bf16.msra.mxu0 %v1196
    %1517 = vmatprep.subr.bf16.mxu0 %v1201
    %1518 = vmatpush1.bf16.msra.mxu0 %v1200
    %1519 = vmatprep.subr.bf16.mxu0 %v1205
    %1520 = vmatpush1.bf16.msra.mxu0 %v1204
    %1521 = vmatprep.subr.bf16.mxu0 %v1209
    %1522 = vmatpush1.bf16.msra.mxu0 %v1208
    %1523 = vmatprep.subr.bf16.mxu0 %v1213
    %1524 = vmatpush1.bf16.msra.mxu0 %v1212
    %1525 = vmatprep.subr.bf16.mxu0 %v1217
    %1526 = vmatpush1.bf16.msra.mxu0 %v1216
    %1527 = vmatprep.subr.bf16.mxu0 %v1221
    %1528 = vmatpush1.bf16.msra.mxu0 %v1220
    %1529 = vmatprep.subr.bf16.mxu0 %v1225
    %1530 = vmatpush1.bf16.msra.mxu0 %v1224
    %1531 = vmatprep.subr.bf16.mxu0 %v1229
    %1532 = vmatpush1.bf16.msra.mxu0 %v1228
    %1533 = vmatprep.subr.bf16.mxu0 %v1233
    %1534 = vmatpush1.bf16.msra.mxu0 %v1232
    %1535 = vmatprep.subr.bf16.mxu0 %v1237
    %1536 = vmatpush1.bf16.msra.mxu0 %v1236
    %1537 = vmatprep.subr.bf16.mxu0 %v1241
    %1538 = vmatpush1.bf16.msra.mxu0 %v1240
    %1539 = vmatprep.subr.bf16.mxu0 %v1245
    %1540 = vmatpush1.bf16.msra.mxu0 %v1244
    %1541 = vmatprep.subr.bf16.mxu0 %v1249
    %1542 = vmatpush1.bf16.msra.mxu0 %v1248
    %1543 = vmatprep.subr.bf16.mxu0 %v1253
    %1544 = vmatpush1.bf16.msra.mxu0 %v1252
    %1545 = vmatprep.subr.bf16.mxu0 %v1257
    %1546 = vmatpush1.bf16.msra.mxu0 %v1256
    %1547 = vmatprep.mubr.bf16.mxu0 %v579
    %1548 = vmatmul.mubr.bf16.gmra.mrb[0].mxu0 %v578
    %v1549 = vpop.f32.mrb[0].mxu0
    %v1550 = vadd.f32 %v1507, %v1549
    %v1551 = vpop.f32.mrb[0].mxu0
    %v1552 = vadd.f32 %v1509, %v1551
    %v1553 = vpop.f32.mrb[0].mxu0
    %v1554 = vadd.f32 %v1511, %v1553
    %v1555 = vpop.f32.mrb[0].mxu0
    %v1556 = vadd.f32 %v1513, %v1555
    %1557 = vdwg.mxu0
    %v1558 = vmul.f32 %v1464, 0.2
    %v1559 = vmul.f32 %v1466, 0.2
    %v1560 = vmul.f32 %v1550, 0.2
    %v1561 = vmul.f32 %v1552, 0.2
    %v1562 = vmul.f32 %v1468, 0.2
    %v1563 = vmul.f32 %v1470, 0.2
    %v1564 = vmul.f32 %v1554, 0.2
    %v1565 = vmul.f32 %v1556, 0.2
    %v1566 = vmax.f32 %v1464, %v1558
    %v1567 = vmax.f32 %v1466, %v1559
    %v1568 = vmax.f32 %v1550, %v1560
    %v1569 = vmax.f32 %v1552, %v1561
    %v1570 = vmax.f32 %v1468, %v1562
    %v1571 = vmax.f32 %v1470, %v1563
    %v1572 = vmax.f32 %v1554, %v1564
    %v1573 = vmax.f32 %v1556, %v1565
    %v1574 = vpack.c.bf16 %v1570, %v1566
    %v1575 = vpack.c.bf16 %v1571, %v1567
    %v1576 = vpack.c.bf16 %v1572, %v1568
    %v1577 = vpack.c.bf16 %v1573, %v1569
    %v1578 = vld [vmem:[#allocation4] sm:$0xff]
    %v1579 = vld [vmem:[#allocation4 + $0x8] sm:$0xff]
    %v1580 = vld [vmem:[#allocation4 + $0x10] sm:$0xff]
    %v1581 = vld [vmem:[#allocation4 + $0x18] sm:$0xff]
    %v1582 = vld [vmem:[#allocation4 + $0x20] sm:$0xff]
    %v1583 = vld [vmem:[#allocation4 + $0x28] sm:$0xff]
    %v1584 = vld [vmem:[#allocation4 + $0x30] sm:$0xff]
    %v1585 = vld [vmem:[#allocation4 + $0x38] sm:$0xff]
    %v1586 = vld [vmem:[#allocation4 + $0x40] sm:$0xff]
    %v1587 = vld [vmem:[#allocation4 + $0x48] sm:$0xff]
    %v1588 = vld [vmem:[#allocation4 + $0x50] sm:$0xff]
    %v1589 = vld [vmem:[#allocation4 + $0x58] sm:$0xff]
    %v1590 = vld [vmem:[#allocation4 + $0x60] sm:$0xff]
    %v1591 = vld [vmem:[#allocation4 + $0x68] sm:$0xff]
    %v1592 = vld [vmem:[#allocation4 + $0x70] sm:$0xff]
    %v1593 = vld [vmem:[#allocation4 + $0x78] sm:$0xff]
    %v1594 = vld [vmem:[#allocation4 + $0x80] sm:$0xff]
    %v1595 = vld [vmem:[#allocation4 + $0x88] sm:$0xff]
    %v1596 = vld [vmem:[#allocation4 + $0x90] sm:$0xff]
    %v1597 = vld [vmem:[#allocation4 + $0x98] sm:$0xff]
    %v1598 = vld [vmem:[#allocation4 + $0xa0] sm:$0xff]
    %v1599 = vld [vmem:[#allocation4 + $0xa8] sm:$0xff]
    %v1600 = vld [vmem:[#allocation4 + $0xb0] sm:$0xff]
    %v1601 = vld [vmem:[#allocation4 + $0xb8] sm:$0xff]
    %v1602 = vld [vmem:[#allocation4 + $0xc0] sm:$0xff]
    %v1603 = vld [vmem:[#allocation4 + $0xc8] sm:$0xff]
    %v1604 = vld [vmem:[#allocation4 + $0xd0] sm:$0xff]
    %v1605 = vld [vmem:[#allocation4 + $0xd8] sm:$0xff]
    %v1606 = vld [vmem:[#allocation4 + $0xe0] sm:$0xff]
    %v1607 = vld [vmem:[#allocation4 + $0xe8] sm:$0xff]
    %v1608 = vld [vmem:[#allocation4 + $0xf0] sm:$0xff]
    %v1609 = vld [vmem:[#allocation4 + $0xf8] sm:$0xff]
    %v1610 = vld [vmem:[#allocation4 + $0x100] sm:$0xff]
    %v1611 = vld [vmem:[#allocation4 + $0x108] sm:$0xff]
    %v1612 = vld [vmem:[#allocation4 + $0x110] sm:$0xff]
    %v1613 = vld [vmem:[#allocation4 + $0x118] sm:$0xff]
    %v1614 = vld [vmem:[#allocation4 + $0x120] sm:$0xff]
    %v1615 = vld [vmem:[#allocation4 + $0x128] sm:$0xff]
    %v1616 = vld [vmem:[#allocation4 + $0x130] sm:$0xff]
    %v1617 = vld [vmem:[#allocation4 + $0x138] sm:$0xff]
    %v1618 = vld [vmem:[#allocation4 + $0x140] sm:$0xff]
    %v1619 = vld [vmem:[#allocation4 + $0x148] sm:$0xff]
    %v1620 = vld [vmem:[#allocation4 + $0x150] sm:$0xff]
    %v1621 = vld [vmem:[#allocation4 + $0x158] sm:$0xff]
    %v1622 = vld [vmem:[#allocation4 + $0x160] sm:$0xff]
    %v1623 = vld [vmem:[#allocation4 + $0x168] sm:$0xff]
    %v1624 = vld [vmem:[#allocation4 + $0x170] sm:$0xff]
    %v1625 = vld [vmem:[#allocation4 + $0x178] sm:$0xff]
    %v1626 = vld [vmem:[#allocation4 + $0x180] sm:$0xff]
    %v1627 = vld [vmem:[#allocation4 + $0x188] sm:$0xff]
    %v1628 = vld [vmem:[#allocation4 + $0x190] sm:$0xff]
    %v1629 = vld [vmem:[#allocation4 + $0x198] sm:$0xff]
    %v1630 = vld [vmem:[#allocation4 + $0x1a0] sm:$0xff]
    %v1631 = vld [vmem:[#allocation4 + $0x1a8] sm:$0xff]
    %v1632 = vld [vmem:[#allocation4 + $0x1b0] sm:$0xff]
    %v1633 = vld [vmem:[#allocation4 + $0x1b8] sm:$0xff]
    %v1634 = vld [vmem:[#allocation4 + $0x1c0] sm:$0xff]
    %v1635 = vld [vmem:[#allocation4 + $0x1c8] sm:$0xff]
    %v1636 = vld [vmem:[#allocation4 + $0x1d0] sm:$0xff]
    %v1637 = vld [vmem:[#allocation4 + $0x1d8] sm:$0xff]
    %v1638 = vld [vmem:[#allocation4 + $0x1e0] sm:$0xff]
    %v1639 = vld [vmem:[#allocation4 + $0x1e8] sm:$0xff]
    %v1640 = vld [vmem:[#allocation4 + $0x1f0] sm:$0xff]
    %v1641 = vld [vmem:[#allocation4 + $0x1f8] sm:$0xff]
    %v1642 = vld [vmem:[#allocation4 + $0x200] sm:$0xff]
    %v1643 = vld [vmem:[#allocation4 + $0x208] sm:$0xff]
    %v1644 = vld [vmem:[#allocation4 + $0x210] sm:$0xff]
    %v1645 = vld [vmem:[#allocation4 + $0x218] sm:$0xff]
    %v1646 = vld [vmem:[#allocation4 + $0x220] sm:$0xff]
    %v1647 = vld [vmem:[#allocation4 + $0x228] sm:$0xff]
    %v1648 = vld [vmem:[#allocation4 + $0x230] sm:$0xff]
    %v1649 = vld [vmem:[#allocation4 + $0x238] sm:$0xff]
    %v1650 = vld [vmem:[#allocation4 + $0x240] sm:$0xff]
    %v1651 = vld [vmem:[#allocation4 + $0x248] sm:$0xff]
    %v1652 = vld [vmem:[#allocation4 + $0x250] sm:$0xff]
    %v1653 = vld [vmem:[#allocation4 + $0x258] sm:$0xff]
    %v1654 = vld [vmem:[#allocation4 + $0x260] sm:$0xff]
    %v1655 = vld [vmem:[#allocation4 + $0x268] sm:$0xff]
    %v1656 = vld [vmem:[#allocation4 + $0x270] sm:$0xff]
    %v1657 = vld [vmem:[#allocation4 + $0x278] sm:$0xff]
    %v1658 = vld [vmem:[#allocation4 + $0x280] sm:$0xff]
    %v1659 = vld [vmem:[#allocation4 + $0x288] sm:$0xff]
    %v1660 = vld [vmem:[#allocation4 + $0x290] sm:$0xff]
    %v1661 = vld [vmem:[#allocation4 + $0x298] sm:$0xff]
    %v1662 = vld [vmem:[#allocation4 + $0x2a0] sm:$0xff]
    %v1663 = vld [vmem:[#allocation4 + $0x2a8] sm:$0xff]
    %v1664 = vld [vmem:[#allocation4 + $0x2b0] sm:$0xff]
    %v1665 = vld [vmem:[#allocation4 + $0x2b8] sm:$0xff]
    %v1666 = vld [vmem:[#allocation4 + $0x2c0] sm:$0xff]
    %v1667 = vld [vmem:[#allocation4 + $0x2c8] sm:$0xff]
    %v1668 = vld [vmem:[#allocation4 + $0x2d0] sm:$0xff]
    %v1669 = vld [vmem:[#allocation4 + $0x2d8] sm:$0xff]
    %v1670 = vld [vmem:[#allocation4 + $0x2e0] sm:$0xff]
    %v1671 = vld [vmem:[#allocation4 + $0x2e8] sm:$0xff]
    %v1672 = vld [vmem:[#allocation4 + $0x2f0] sm:$0xff]
    %v1673 = vld [vmem:[#allocation4 + $0x2f8] sm:$0xff]
    %v1674 = vld [vmem:[#allocation4 + $0x300] sm:$0xff]
    %v1675 = vld [vmem:[#allocation4 + $0x308] sm:$0xff]
    %v1676 = vld [vmem:[#allocation4 + $0x310] sm:$0xff]
    %v1677 = vld [vmem:[#allocation4 + $0x318] sm:$0xff]
    %v1678 = vld [vmem:[#allocation4 + $0x320] sm:$0xff]
    %v1679 = vld [vmem:[#allocation4 + $0x328] sm:$0xff]
    %v1680 = vld [vmem:[#allocation4 + $0x330] sm:$0xff]
    %v1681 = vld [vmem:[#allocation4 + $0x338] sm:$0xff]
    %v1682 = vld [vmem:[#allocation4 + $0x340] sm:$0xff]
    %v1683 = vld [vmem:[#allocation4 + $0x348] sm:$0xff]
    %v1684 = vld [vmem:[#allocation4 + $0x350] sm:$0xff]
    %v1685 = vld [vmem:[#allocation4 + $0x358] sm:$0xff]
    %v1686 = vld [vmem:[#allocation4 + $0x360] sm:$0xff]
    %v1687 = vld [vmem:[#allocation4 + $0x368] sm:$0xff]
    %v1688 = vld [vmem:[#allocation4 + $0x370] sm:$0xff]
    %v1689 = vld [vmem:[#allocation4 + $0x378] sm:$0xff]
    %v1690 = vld [vmem:[#allocation4 + $0x380] sm:$0xff]
    %v1691 = vld [vmem:[#allocation4 + $0x388] sm:$0xff]
    %v1692 = vld [vmem:[#allocation4 + $0x390] sm:$0xff]
    %v1693 = vld [vmem:[#allocation4 + $0x398] sm:$0xff]
    %v1694 = vld [vmem:[#allocation4 + $0x3a0] sm:$0xff]
    %v1695 = vld [vmem:[#allocation4 + $0x3a8] sm:$0xff]
    %v1696 = vld [vmem:[#allocation4 + $0x3b0] sm:$0xff]
    %v1697 = vld [vmem:[#allocation4 + $0x3b8] sm:$0xff]
    %v1698 = vld [vmem:[#allocation4 + $0x3c0] sm:$0xff]
    %v1699 = vld [vmem:[#allocation4 + $0x3c8] sm:$0xff]
    %v1700 = vld [vmem:[#allocation4 + $0x3d0] sm:$0xff]
    %v1701 = vld [vmem:[#allocation4 + $0x3d8] sm:$0xff]
    %v1702 = vld [vmem:[#allocation4 + $0x3e0] sm:$0xff]
    %v1703 = vld [vmem:[#allocation4 + $0x3e8] sm:$0xff]
    %v1704 = vld [vmem:[#allocation4 + $0x3f0] sm:$0xff]
    %v1705 = vld [vmem:[#allocation4 + $0x3f8] sm:$0xff]
    %v1706 = vlaneseq
    %v1707 = vshrl.u32 %v1706, 7
    %v1708 = vsub.s32 1, %v1707
    %v1709 = vrot.slane %v68, %v1708
    %v1710 = vlaneseq
    %v1711 = vshrl.u32 %v1710, 7
    %v1712 = vsub.s32 5, %v1711
    %v1713 = vrot.slane %v68, %v1712
    %v1714 = vlaneseq
    %v1715 = vshrl.u32 %v1714, 7
    %v1716 = vsub.s32 1, %v1715
    %v1717 = vrot.slane %v69, %v1716
    %v1718 = vlaneseq
    %v1719 = vshrl.u32 %v1718, 7
    %v1720 = vsub.s32 5, %v1719
    %v1721 = vrot.slane %v69, %v1720
    %v1726 = vlaneseq
    %v1727 = vshrl.u32 %v1726, 7
    %v1728 = vsub.s32 1, %v1727
    %v1729 = vrot.slane %v1709, %v1728
    %v1730 = vlaneseq
    %v1731 = vshrl.u32 %v1730, 7
    %v1732 = vsub.s32 1, %v1731
    %v1733 = vrot.slane %v1713, %v1732
    %v1734 = vlaneseq
    %v1735 = vshrl.u32 %v1734, 7
    %v1736 = vsub.s32 1, %v1735
    %v1737 = vrot.slane %v1717, %v1736
    %v1738 = vlaneseq
    %v1739 = vshrl.u32 %v1738, 7
    %v1740 = vsub.s32 1, %v1739
    %v1741 = vrot.slane %v1721, %v1740
    %v1870 = vunpack.c.l.b16 %v1578
    %v1871 = vunpack.c.h.b16 %v1578
    %v1872 = vunpack.c.l.b16 %v1579
    %v1873 = vunpack.c.h.b16 %v1579
    %v1874 = vunpack.c.l.b16 %v1580
    %v1875 = vunpack.c.h.b16 %v1580
    %v1876 = vunpack.c.l.b16 %v1581
    %v1877 = vunpack.c.h.b16 %v1581
    %v1878 = vunpack.c.l.b16 %v1582
    %v1879 = vunpack.c.h.b16 %v1582
    %v1880 = vunpack.c.l.b16 %v1583
    %v1881 = vunpack.c.h.b16 %v1583
    %v1882 = vunpack.c.l.b16 %v1584
    %v1883 = vunpack.c.h.b16 %v1584
    %v1884 = vunpack.c.l.b16 %v1585
    %v1885 = vunpack.c.h.b16 %v1585
    %v1886 = vunpack.c.l.b16 %v1586
    %v1887 = vunpack.c.h.b16 %v1586
    %v1888 = vunpack.c.l.b16 %v1587
    %v1889 = vunpack.c.h.b16 %v1587
    %v1890 = vunpack.c.l.b16 %v1588
    %v1891 = vunpack.c.h.b16 %v1588
    %v1892 = vunpack.c.l.b16 %v1589
    %v1893 = vunpack.c.h.b16 %v1589
    %v1894 = vunpack.c.l.b16 %v1590
    %v1895 = vunpack.c.h.b16 %v1590
    %v1896 = vunpack.c.l.b16 %v1591
    %v1897 = vunpack.c.h.b16 %v1591
    %v1898 = vunpack.c.l.b16 %v1592
    %v1899 = vunpack.c.h.b16 %v1592
    %v1900 = vunpack.c.l.b16 %v1593
    %v1901 = vunpack.c.h.b16 %v1593
    %v1902 = vunpack.c.l.b16 %v1594
    %v1903 = vunpack.c.h.b16 %v1594
    %v1904 = vunpack.c.l.b16 %v1595
    %v1905 = vunpack.c.h.b16 %v1595
    %v1906 = vunpack.c.l.b16 %v1596
    %v1907 = vunpack.c.h.b16 %v1596
    %v1908 = vunpack.c.l.b16 %v1597
    %v1909 = vunpack.c.h.b16 %v1597
    %v1910 = vunpack.c.l.b16 %v1598
    %v1911 = vunpack.c.h.b16 %v1598
    %v1912 = vunpack.c.l.b16 %v1599
    %v1913 = vunpack.c.h.b16 %v1599
    %v1914 = vunpack.c.l.b16 %v1600
    %v1915 = vunpack.c.h.b16 %v1600
    %v1916 = vunpack.c.l.b16 %v1601
    %v1917 = vunpack.c.h.b16 %v1601
    %v1918 = vunpack.c.l.b16 %v1602
    %v1919 = vunpack.c.h.b16 %v1602
    %v1920 = vunpack.c.l.b16 %v1603
    %v1921 = vunpack.c.h.b16 %v1603
    %v1922 = vunpack.c.l.b16 %v1604
    %v1923 = vunpack.c.h.b16 %v1604
    %v1924 = vunpack.c.l.b16 %v1605
    %v1925 = vunpack.c.h.b16 %v1605
    %v1926 = vunpack.c.l.b16 %v1606
    %v1927 = vunpack.c.h.b16 %v1606
    %v1928 = vunpack.c.l.b16 %v1607
    %v1929 = vunpack.c.h.b16 %v1607
    %v1930 = vunpack.c.l.b16 %v1608
    %v1931 = vunpack.c.h.b16 %v1608
    %v1932 = vunpack.c.l.b16 %v1609
    %v1933 = vunpack.c.h.b16 %v1609
    %v1934 = vunpack.c.l.b16 %v1610
    %v1935 = vunpack.c.h.b16 %v1610
    %v1936 = vunpack.c.l.b16 %v1611
    %v1937 = vunpack.c.h.b16 %v1611
    %v1938 = vunpack.c.l.b16 %v1612
    %v1939 = vunpack.c.h.b16 %v1612
    %v1940 = vunpack.c.l.b16 %v1613
    %v1941 = vunpack.c.h.b16 %v1613
    %v1942 = vunpack.c.l.b16 %v1614
    %v1943 = vunpack.c.h.b16 %v1614
    %v1944 = vunpack.c.l.b16 %v1615
    %v1945 = vunpack.c.h.b16 %v1615
    %v1946 = vunpack.c.l.b16 %v1616
    %v1947 = vunpack.c.h.b16 %v1616
    %v1948 = vunpack.c.l.b16 %v1617
    %v1949 = vunpack.c.h.b16 %v1617
    %v1950 = vunpack.c.l.b16 %v1618
    %v1951 = vunpack.c.h.b16 %v1618
    %v1952 = vunpack.c.l.b16 %v1619
    %v1953 = vunpack.c.h.b16 %v1619
    %v1954 = vunpack.c.l.b16 %v1620
    %v1955 = vunpack.c.h.b16 %v1620
    %v1956 = vunpack.c.l.b16 %v1621
    %v1957 = vunpack.c.h.b16 %v1621
    %v1958 = vunpack.c.l.b16 %v1622
    %v1959 = vunpack.c.h.b16 %v1622
    %v1960 = vunpack.c.l.b16 %v1623
    %v1961 = vunpack.c.h.b16 %v1623
    %v1962 = vunpack.c.l.b16 %v1624
    %v1963 = vunpack.c.h.b16 %v1624
    %v1964 = vunpack.c.l.b16 %v1625
    %v1965 = vunpack.c.h.b16 %v1625
    %v1966 = vunpack.c.l.b16 %v1626
    %v1967 = vunpack.c.h.b16 %v1626
    %v1968 = vunpack.c.l.b16 %v1627
    %v1969 = vunpack.c.h.b16 %v1627
    %v1970 = vunpack.c.l.b16 %v1628
    %v1971 = vunpack.c.h.b16 %v1628
    %v1972 = vunpack.c.l.b16 %v1629
    %v1973 = vunpack.c.h.b16 %v1629
    %v1974 = vunpack.c.l.b16 %v1630
    %v1975 = vunpack.c.h.b16 %v1630
    %v1976 = vunpack.c.l.b16 %v1631
    %v1977 = vunpack.c.h.b16 %v1631
    %v1978 = vunpack.c.l.b16 %v1632
    %v1979 = vunpack.c.h.b16 %v1632
    %v1980 = vunpack.c.l.b16 %v1633
    %v1981 = vunpack.c.h.b16 %v1633
    %v1982 = vunpack.c.l.b16 %v1634
    %v1983 = vunpack.c.h.b16 %v1634
    %v1984 = vunpack.c.l.b16 %v1635
    %v1985 = vunpack.c.h.b16 %v1635
    %v1986 = vunpack.c.l.b16 %v1636
    %v1987 = vunpack.c.h.b16 %v1636
    %v1988 = vunpack.c.l.b16 %v1637
    %v1989 = vunpack.c.h.b16 %v1637
    %v1990 = vunpack.c.l.b16 %v1638
    %v1991 = vunpack.c.h.b16 %v1638
    %v1992 = vunpack.c.l.b16 %v1639
    %v1993 = vunpack.c.h.b16 %v1639
    %v1994 = vunpack.c.l.b16 %v1640
    %v1995 = vunpack.c.h.b16 %v1640
    %v1996 = vunpack.c.l.b16 %v1641
    %v1997 = vunpack.c.h.b16 %v1641
    %v1998 = vunpack.c.l.b16 %v1642
    %v1999 = vunpack.c.h.b16 %v1642
    %v2000 = vunpack.c.l.b16 %v1643
    %v2001 = vunpack.c.h.b16 %v1643
    %v2002 = vunpack.c.l.b16 %v1644
    %v2003 = vunpack.c.h.b16 %v1644
    %v2004 = vunpack.c.l.b16 %v1645
    %v2005 = vunpack.c.h.b16 %v1645
    %v2006 = vunpack.c.l.b16 %v1646
    %v2007 = vunpack.c.h.b16 %v1646
    %v2008 = vunpack.c.l.b16 %v1647
    %v2009 = vunpack.c.h.b16 %v1647
    %v2010 = vunpack.c.l.b16 %v1648
    %v2011 = vunpack.c.h.b16 %v1648
    %v2012 = vunpack.c.l.b16 %v1649
    %v2013 = vunpack.c.h.b16 %v1649
    %v2014 = vunpack.c.l.b16 %v1650
    %v2015 = vunpack.c.h.b16 %v1650
    %v2016 = vunpack.c.l.b16 %v1651
    %v2017 = vunpack.c.h.b16 %v1651
    %v2018 = vunpack.c.l.b16 %v1652
    %v2019 = vunpack.c.h.b16 %v1652
    %v2020 = vunpack.c.l.b16 %v1653
    %v2021 = vunpack.c.h.b16 %v1653
    %v2022 = vunpack.c.l.b16 %v1654
    %v2023 = vunpack.c.h.b16 %v1654
    %v2024 = vunpack.c.l.b16 %v1655
    %v2025 = vunpack.c.h.b16 %v1655
    %v2026 = vunpack.c.l.b16 %v1656
    %v2027 = vunpack.c.h.b16 %v1656
    %v2028 = vunpack.c.l.b16 %v1657
    %v2029 = vunpack.c.h.b16 %v1657
    %v2030 = vunpack.c.l.b16 %v1658
    %v2031 = vunpack.c.h.b16 %v1658
    %v2032 = vunpack.c.l.b16 %v1659
    %v2033 = vunpack.c.h.b16 %v1659
    %v2034 = vunpack.c.l.b16 %v1660
    %v2035 = vunpack.c.h.b16 %v1660
    %v2036 = vunpack.c.l.b16 %v1661
    %v2037 = vunpack.c.h.b16 %v1661
    %v2038 = vunpack.c.l.b16 %v1662
    %v2039 = vunpack.c.h.b16 %v1662
    %v2040 = vunpack.c.l.b16 %v1663
    %v2041 = vunpack.c.h.b16 %v1663
    %v2042 = vunpack.c.l.b16 %v1664
    %v2043 = vunpack.c.h.b16 %v1664
    %v2044 = vunpack.c.l.b16 %v1665
    %v2045 = vunpack.c.h.b16 %v1665
    %v2046 = vunpack.c.l.b16 %v1666
    %v2047 = vunpack.c.h.b16 %v1666
    %v2048 = vunpack.c.l.b16 %v1667
    %v2049 = vunpack.c.h.b16 %v1667
    %v2050 = vunpack.c.l.b16 %v1668
    %v2051 = vunpack.c.h.b16 %v1668
    %v2052 = vunpack.c.l.b16 %v1669
    %v2053 = vunpack.c.h.b16 %v1669
    %v2054 = vunpack.c.l.b16 %v1670
    %v2055 = vunpack.c.h.b16 %v1670
    %v2056 = vunpack.c.l.b16 %v1671
    %v2057 = vunpack.c.h.b16 %v1671
    %v2058 = vunpack.c.l.b16 %v1672
    %v2059 = vunpack.c.h.b16 %v1672
    %v2060 = vunpack.c.l.b16 %v1673
    %v2061 = vunpack.c.h.b16 %v1673
    %v2062 = vunpack.c.l.b16 %v1674
    %v2063 = vunpack.c.h.b16 %v1674
    %v2064 = vunpack.c.l.b16 %v1675
    %v2065 = vunpack.c.h.b16 %v1675
    %v2066 = vunpack.c.l.b16 %v1676
    %v2067 = vunpack.c.h.b16 %v1676
    %v2068 = vunpack.c.l.b16 %v1677
    %v2069 = vunpack.c.h.b16 %v1677
    %v2070 = vunpack.c.l.b16 %v1678
    %v2071 = vunpack.c.h.b16 %v1678
    %v2072 = vunpack.c.l.b16 %v1679
    %v2073 = vunpack.c.h.b16 %v1679
    %v2074 = vunpack.c.l.b16 %v1680
    %v2075 = vunpack.c.h.b16 %v1680
    %v2076 = vunpack.c.l.b16 %v1681
    %v2077 = vunpack.c.h.b16 %v1681
    %v2078 = vunpack.c.l.b16 %v1682
    %v2079 = vunpack.c.h.b16 %v1682
    %v2080 = vunpack.c.l.b16 %v1683
    %v2081 = vunpack.c.h.b16 %v1683
    %v2082 = vunpack.c.l.b16 %v1684
    %v2083 = vunpack.c.h.b16 %v1684
    %v2084 = vunpack.c.l.b16 %v1685
    %v2085 = vunpack.c.h.b16 %v1685
    %v2086 = vunpack.c.l.b16 %v1686
    %v2087 = vunpack.c.h.b16 %v1686
    %v2088 = vunpack.c.l.b16 %v1687
    %v2089 = vunpack.c.h.b16 %v1687
    %v2090 = vunpack.c.l.b16 %v1688
    %v2091 = vunpack.c.h.b16 %v1688
    %v2092 = vunpack.c.l.b16 %v1689
    %v2093 = vunpack.c.h.b16 %v1689
    %v2094 = vunpack.c.l.b16 %v1690
    %v2095 = vunpack.c.h.b16 %v1690
    %v2096 = vunpack.c.l.b16 %v1691
    %v2097 = vunpack.c.h.b16 %v1691
    %v2098 = vunpack.c.l.b16 %v1692
    %v2099 = vunpack.c.h.b16 %v1692
    %v2100 = vunpack.c.l.b16 %v1693
    %v2101 = vunpack.c.h.b16 %v1693
    %v2102 = vunpack.c.l.b16 %v1694
    %v2103 = vunpack.c.h.b16 %v1694
    %v2104 = vunpack.c.l.b16 %v1695
    %v2105 = vunpack.c.h.b16 %v1695
    %v2106 = vunpack.c.l.b16 %v1696
    %v2107 = vunpack.c.h.b16 %v1696
    %v2108 = vunpack.c.l.b16 %v1697
    %v2109 = vunpack.c.h.b16 %v1697
    %v2110 = vunpack.c.l.b16 %v1698
    %v2111 = vunpack.c.h.b16 %v1698
    %v2112 = vunpack.c.l.b16 %v1699
    %v2113 = vunpack.c.h.b16 %v1699
    %v2114 = vunpack.c.l.b16 %v1700
    %v2115 = vunpack.c.h.b16 %v1700
    %v2116 = vunpack.c.l.b16 %v1701
    %v2117 = vunpack.c.h.b16 %v1701
    %v2118 = vunpack.c.l.b16 %v1702
    %v2119 = vunpack.c.h.b16 %v1702
    %v2120 = vunpack.c.l.b16 %v1703
    %v2121 = vunpack.c.h.b16 %v1703
    %v2122 = vunpack.c.l.b16 %v1704
    %v2123 = vunpack.c.h.b16 %v1704
    %v2124 = vunpack.c.l.b16 %v1705
    %v2125 = vunpack.c.h.b16 %v1705
    %v2126 = vpack.c.b16 %v1874, %v1870
    %v2127 = vpack.c.b16 %v1875, %v1871
    %v2128 = vpack.c.b16 %v1876, %v1872
    %v2129 = vpack.c.b16 %v1877, %v1873
    %v2130 = vpack.c.b16 %v1882, %v1878
    %v2131 = vpack.c.b16 %v1883, %v1879
    %v2132 = vpack.c.b16 %v1884, %v1880
    %v2133 = vpack.c.b16 %v1885, %v1881
    %v2134 = vpack.c.b16 %v1890, %v1886
    %v2135 = vpack.c.b16 %v1891, %v1887
    %v2136 = vpack.c.b16 %v1892, %v1888
    %v2137 = vpack.c.b16 %v1893, %v1889
    %v2138 = vpack.c.b16 %v1898, %v1894
    %v2139 = vpack.c.b16 %v1899, %v1895
    %v2140 = vpack.c.b16 %v1900, %v1896
    %v2141 = vpack.c.b16 %v1901, %v1897
    %v2142 = vpack.c.b16 %v1906, %v1902
    %v2143 = vpack.c.b16 %v1907, %v1903
    %v2144 = vpack.c.b16 %v1908, %v1904
    %v2145 = vpack.c.b16 %v1909, %v1905
    %v2146 = vpack.c.b16 %v1914, %v1910
    %v2147 = vpack.c.b16 %v1915, %v1911
    %v2148 = vpack.c.b16 %v1916, %v1912
    %v2149 = vpack.c.b16 %v1917, %v1913
    %v2150 = vpack.c.b16 %v1922, %v1918
    %v2151 = vpack.c.b16 %v1923, %v1919
    %v2152 = vpack.c.b16 %v1924, %v1920
    %v2153 = vpack.c.b16 %v1925, %v1921
    %v2154 = vpack.c.b16 %v1930, %v1926
    %v2155 = vpack.c.b16 %v1931, %v1927
    %v2156 = vpack.c.b16 %v1932, %v1928
    %v2157 = vpack.c.b16 %v1933, %v1929
    %v2158 = vpack.c.b16 %v1938, %v1934
    %v2159 = vpack.c.b16 %v1939, %v1935
    %v2160 = vpack.c.b16 %v1940, %v1936
    %v2161 = vpack.c.b16 %v1941, %v1937
    %v2162 = vpack.c.b16 %v1946, %v1942
    %v2163 = vpack.c.b16 %v1947, %v1943
    %v2164 = vpack.c.b16 %v1948, %v1944
    %v2165 = vpack.c.b16 %v1949, %v1945
    %v2166 = vpack.c.b16 %v1954, %v1950
    %v2167 = vpack.c.b16 %v1955, %v1951
    %v2168 = vpack.c.b16 %v1956, %v1952
    %v2169 = vpack.c.b16 %v1957, %v1953
    %v2170 = vpack.c.b16 %v1962, %v1958
    %v2171 = vpack.c.b16 %v1963, %v1959
    %v2172 = vpack.c.b16 %v1964, %v1960
    %v2173 = vpack.c.b16 %v1965, %v1961
    %v2174 = vpack.c.b16 %v1970, %v1966
    %v2175 = vpack.c.b16 %v1971, %v1967
    %v2176 = vpack.c.b16 %v1972, %v1968
    %v2177 = vpack.c.b16 %v1973, %v1969
    %v2178 = vpack.c.b16 %v1978, %v1974
    %v2179 = vpack.c.b16 %v1979, %v1975
    %v2180 = vpack.c.b16 %v1980, %v1976
    %v2181 = vpack.c.b16 %v1981, %v1977
    %v2182 = vpack.c.b16 %v1986, %v1982
    %v2183 = vpack.c.b16 %v1987, %v1983
    %v2184 = vpack.c.b16 %v1988, %v1984
    %v2185 = vpack.c.b16 %v1989, %v1985
    %v2186 = vpack.c.b16 %v1994, %v1990
    %v2187 = vpack.c.b16 %v1995, %v1991
    %v2188 = vpack.c.b16 %v1996, %v1992
    %v2189 = vpack.c.b16 %v1997, %v1993
    %v2190 = vpack.c.b16 %v2002, %v1998
    %v2191 = vpack.c.b16 %v2003, %v1999
    %v2192 = vpack.c.b16 %v2004, %v2000
    %v2193 = vpack.c.b16 %v2005, %v2001
    %v2194 = vpack.c.b16 %v2010, %v2006
    %v2195 = vpack.c.b16 %v2011, %v2007
    %v2196 = vpack.c.b16 %v2012, %v2008
    %v2197 = vpack.c.b16 %v2013, %v2009
    %v2198 = vpack.c.b16 %v2018, %v2014
    %v2199 = vpack.c.b16 %v2019, %v2015
    %v2200 = vpack.c.b16 %v2020, %v2016
    %v2201 = vpack.c.b16 %v2021, %v2017
    %v2202 = vpack.c.b16 %v2026, %v2022
    %v2203 = vpack.c.b16 %v2027, %v2023
    %v2204 = vpack.c.b16 %v2028, %v2024
    %v2205 = vpack.c.b16 %v2029, %v2025
    %v2206 = vpack.c.b16 %v2034, %v2030
    %v2207 = vpack.c.b16 %v2035, %v2031
    %v2208 = vpack.c.b16 %v2036, %v2032
    %v2209 = vpack.c.b16 %v2037, %v2033
    %v2210 = vpack.c.b16 %v2042, %v2038
    %v2211 = vpack.c.b16 %v2043, %v2039
    %v2212 = vpack.c.b16 %v2044, %v2040
    %v2213 = vpack.c.b16 %v2045, %v2041
    %v2214 = vpack.c.b16 %v2050, %v2046
    %v2215 = vpack.c.b16 %v2051, %v2047
    %v2216 = vpack.c.b16 %v2052, %v2048
    %v2217 = vpack.c.b16 %v2053, %v2049
    %v2218 = vpack.c.b16 %v2058, %v2054
    %v2219 = vpack.c.b16 %v2059, %v2055
    %v2220 = vpack.c.b16 %v2060, %v2056
    %v2221 = vpack.c.b16 %v2061, %v2057
    %v2222 = vpack.c.b16 %v2066, %v2062
    %v2223 = vpack.c.b16 %v2067, %v2063
    %v2224 = vpack.c.b16 %v2068, %v2064
    %v2225 = vpack.c.b16 %v2069, %v2065
    %v2226 = vpack.c.b16 %v2074, %v2070
    %v2227 = vpack.c.b16 %v2075, %v2071
    %v2228 = vpack.c.b16 %v2076, %v2072
    %v2229 = vpack.c.b16 %v2077, %v2073
    %v2230 = vpack.c.b16 %v2082, %v2078
    %v2231 = vpack.c.b16 %v2083, %v2079
    %v2232 = vpack.c.b16 %v2084, %v2080
    %v2233 = vpack.c.b16 %v2085, %v2081
    %v2234 = vpack.c.b16 %v2090, %v2086
    %v2235 = vpack.c.b16 %v2091, %v2087
    %v2236 = vpack.c.b16 %v2092, %v2088
    %v2237 = vpack.c.b16 %v2093, %v2089
    %v2238 = vpack.c.b16 %v2098, %v2094
    %v2239 = vpack.c.b16 %v2099, %v2095
    %v2240 = vpack.c.b16 %v2100, %v2096
    %v2241 = vpack.c.b16 %v2101, %v2097
    %v2242 = vpack.c.b16 %v2106, %v2102
    %v2243 = vpack.c.b16 %v2107, %v2103
    %v2244 = vpack.c.b16 %v2108, %v2104
    %v2245 = vpack.c.b16 %v2109, %v2105
    %v2246 = vpack.c.b16 %v2114, %v2110
    %v2247 = vpack.c.b16 %v2115, %v2111
    %v2248 = vpack.c.b16 %v2116, %v2112
    %v2249 = vpack.c.b16 %v2117, %v2113
    %v2250 = vpack.c.b16 %v2122, %v2118
    %v2251 = vpack.c.b16 %v2123, %v2119
    %v2252 = vpack.c.b16 %v2124, %v2120
    %v2253 = vpack.c.b16 %v2125, %v2121
    %2382 = vmatprep.subr.bf16.mxu0 %v2127
    %2383 = vmatpush1.bf16.msra.mxu0 %v2126
    %2384 = vmatprep.subr.bf16.mxu0 %v2131
    %2385 = vmatpush1.bf16.msra.mxu0 %v2130
    %2386 = vmatprep.subr.bf16.mxu0 %v2135
    %2387 = vmatpush1.bf16.msra.mxu0 %v2134
    %2388 = vmatprep.subr.bf16.mxu0 %v2139
    %2389 = vmatpush1.bf16.msra.mxu0 %v2138
    %2390 = vmatprep.subr.bf16.mxu0 %v2143
    %2391 = vmatpush1.bf16.msra.mxu0 %v2142
    %2392 = vmatprep.subr.bf16.mxu0 %v2147
    %2393 = vmatpush1.bf16.msra.mxu0 %v2146
    %2394 = vmatprep.subr.bf16.mxu0 %v2151
    %2395 = vmatpush1.bf16.msra.mxu0 %v2150
    %2396 = vmatprep.subr.bf16.mxu0 %v2155
    %2397 = vmatpush1.bf16.msra.mxu0 %v2154
    %2398 = vmatprep.subr.bf16.mxu0 %v2159
    %2399 = vmatpush1.bf16.msra.mxu0 %v2158
    %2400 = vmatprep.subr.bf16.mxu0 %v2163
    %2401 = vmatpush1.bf16.msra.mxu0 %v2162
    %2402 = vmatprep.subr.bf16.mxu0 %v2167
    %2403 = vmatpush1.bf16.msra.mxu0 %v2166
    %2404 = vmatprep.subr.bf16.mxu0 %v2171
    %2405 = vmatpush1.bf16.msra.mxu0 %v2170
    %2406 = vmatprep.subr.bf16.mxu0 %v2175
    %2407 = vmatpush1.bf16.msra.mxu0 %v2174
    %2408 = vmatprep.subr.bf16.mxu0 %v2179
    %2409 = vmatpush1.bf16.msra.mxu0 %v2178
    %2410 = vmatprep.subr.bf16.mxu0 %v2183
    %2411 = vmatpush1.bf16.msra.mxu0 %v2182
    %2412 = vmatprep.subr.bf16.mxu0 %v2187
    %2413 = vmatpush1.bf16.msra.mxu0 %v2186
    %2414 = vmatprep.mubr.bf16.mxu0 %v1575
    %2415 = vmatmul.mubr.bf16.gmra.mrb[0].mxu0 %v1574
    %v2416 = vpop.f32.mrb[0].mxu0
    %v2417 = vadd.f32 %v1729, %v2416
    %v2418 = vpop.f32.mrb[0].mxu0
    %v2419 = vadd.f32 %v1733, %v2418
    %v2420 = vpop.f32.mrb[0].mxu0
    %v2421 = vadd.f32 %v1729, %v2420
    %v2422 = vpop.f32.mrb[0].mxu0
    %v2423 = vadd.f32 %v1733, %v2422
    %2424 = vdwg.mxu0
    %2425 = vmatprep.subr.bf16.mxu0 %v2191
    %2426 = vmatpush1.bf16.msra.mxu0 %v2190
    %2427 = vmatprep.subr.bf16.mxu0 %v2195
    %2428 = vmatpush1.bf16.msra.mxu0 %v2194
    %2429 = vmatprep.subr.bf16.mxu0 %v2199
    %2430 = vmatpush1.bf16.msra.mxu0 %v2198
    %2431 = vmatprep.subr.bf16.mxu0 %v2203
    %2432 = vmatpush1.bf16.msra.mxu0 %v2202
    %2433 = vmatprep.subr.bf16.mxu0 %v2207
    %2434 = vmatpush1.bf16.msra.mxu0 %v2206
    %2435 = vmatprep.subr.bf16.mxu0 %v2211
    %2436 = vmatpush1.bf16.msra.mxu0 %v2210
    %2437 = vmatprep.subr.bf16.mxu0 %v2215
    %2438 = vmatpush1.bf16.msra.mxu0 %v2214
    %2439 = vmatprep.subr.bf16.mxu0 %v2219
    %2440 = vmatpush1.bf16.msra.mxu0 %v2218
    %2441 = vmatprep.subr.bf16.mxu0 %v2223
    %2442 = vmatpush1.bf16.msra.mxu0 %v2222
    %2443 = vmatprep.subr.bf16.mxu0 %v2227
    %2444 = vmatpush1.bf16.msra.mxu0 %v2226
    %2445 = vmatprep.subr.bf16.mxu0 %v2231
    %2446 = vmatpush1.bf16.msra.mxu0 %v2230
    %2447 = vmatprep.subr.bf16.mxu0 %v2235
    %2448 = vmatpush1.bf16.msra.mxu0 %v2234
    %2449 = vmatprep.subr.bf16.mxu0 %v2239
    %2450 = vmatpush1.bf16.msra.mxu0 %v2238
    %2451 = vmatprep.subr.bf16.mxu0 %v2243
    %2452 = vmatpush1.bf16.msra.mxu0 %v2242
    %2453 = vmatprep.subr.bf16.mxu0 %v2247
    %2454 = vmatpush1.bf16.msra.mxu0 %v2246
    %2455 = vmatprep.subr.bf16.mxu0 %v2251
    %2456 = vmatpush1.bf16.msra.mxu0 %v2250
    %2457 = vmatprep.mubr.bf16.mxu0 %v1577
    %2458 = vmatmul.mubr.bf16.gmra.mrb[0].mxu0 %v1576
    %v2459 = vpop.f32.mrb[0].mxu0
    %v2460 = vadd.f32 %v2417, %v2459
    %v2461 = vpop.f32.mrb[0].mxu0
    %v2462 = vadd.f32 %v2419, %v2461
    %v2463 = vpop.f32.mrb[0].mxu0
    %v2464 = vadd.f32 %v2421, %v2463
    %v2465 = vpop.f32.mrb[0].mxu0
    %v2466 = vadd.f32 %v2423, %v2465
    %2467 = vdwg.mxu0
    %2468 = vmatprep.subr.bf16.mxu0 %v2129
    %2469 = vmatpush1.bf16.msra.mxu0 %v2128
    %2470 = vmatprep.subr.bf16.mxu0 %v2133
    %2471 = vmatpush1.bf16.msra.mxu0 %v2132
    %2472 = vmatprep.subr.bf16.mxu0 %v2137
    %2473 = vmatpush1.bf16.msra.mxu0 %v2136
    %2474 = vmatprep.subr.bf16.mxu0 %v2141
    %2475 = vmatpush1.bf16.msra.mxu0 %v2140
    %2476 = vmatprep.subr.bf16.mxu0 %v2145
    %2477 = vmatpush1.bf16.msra.mxu0 %v2144
    %2478 = vmatprep.subr.bf16.mxu0 %v2149
    %2479 = vmatpush1.bf16.msra.mxu0 %v2148
    %2480 = vmatprep.subr.bf16.mxu0 %v2153
    %2481 = vmatpush1.bf16.msra.mxu0 %v2152
    %2482 = vmatprep.subr.bf16.mxu0 %v2157
    %2483 = vmatpush1.bf16.msra.mxu0 %v2156
    %2484 = vmatprep.subr.bf16.mxu0 %v2161
    %2485 = vmatpush1.bf16.msra.mxu0 %v2160
    %2486 = vmatprep.subr.bf16.mxu0 %v2165
    %2487 = vmatpush1.bf16.msra.mxu0 %v2164
    %2488 = vmatprep.subr.bf16.mxu0 %v2169
    %2489 = vmatpush1.bf16.msra.mxu0 %v2168
    %2490 = vmatprep.subr.bf16.mxu0 %v2173
    %2491 = vmatpush1.bf16.msra.mxu0 %v2172
    %2492 = vmatprep.subr.bf16.mxu0 %v2177
    %2493 = vmatpush1.bf16.msra.mxu0 %v2176
    %2494 = vmatprep.subr.bf16.mxu0 %v2181
    %2495 = vmatpush1.bf16.msra.mxu0 %v2180
    %2496 = vmatprep.subr.bf16.mxu0 %v2185
    %2497 = vmatpush1.bf16.msra.mxu0 %v2184
    %2498 = vmatprep.subr.bf16.mxu0 %v2189
    %2499 = vmatpush1.bf16.msra.mxu0 %v2188
    %2500 = vmatprep.mubr.bf16.mxu0 %v1575
    %2501 = vmatmul.mubr.bf16.gmra.mrb[0].mxu0 %v1574
    %v2502 = vpop.f32.mrb[0].mxu0
    %v2503 = vadd.f32 %v1737, %v2502
    %v2504 = vpop.f32.mrb[0].mxu0
    %v2505 = vadd.f32 %v1741, %v2504
    %v2506 = vpop.f32.mrb[0].mxu0
    %v2507 = vadd.f32 %v1737, %v2506
    %v2508 = vpop.f32.mrb[0].mxu0
    %v2509 = vadd.f32 %v1741, %v2508
    %2510 = vdwg.mxu0
    %2511 = vmatprep.subr.bf16.mxu0 %v2193
    %2512 = vmatpush1.bf16.msra.mxu0 %v2192
    %2513 = vmatprep.subr.bf16.mxu0 %v2197
    %2514 = vmatpush1.bf16.msra.mxu0 %v2196
    %2515 = vmatprep.subr.bf16.mxu0 %v2201
    %2516 = vmatpush1.bf16.msra.mxu0 %v2200
    %2517 = vmatprep.subr.bf16.mxu0 %v2205
    %2518 = vmatpush1.bf16.msra.mxu0 %v2204
    %2519 = vmatprep.subr.bf16.mxu0 %v2209
    %2520 = vmatpush1.bf16.msra.mxu0 %v2208
    %2521 = vmatprep.subr.bf16.mxu0 %v2213
    %2522 = vmatpush1.bf16.msra.mxu0 %v2212
    %2523 = vmatprep.subr.bf16.mxu0 %v2217
    %2524 = vmatpush1.bf16.msra.mxu0 %v2216
    %2525 = vmatprep.subr.bf16.mxu0 %v2221
    %2526 = vmatpush1.bf16.msra.mxu0 %v2220
    %2527 = vmatprep.subr.bf16.mxu0 %v2225
    %2528 = vmatpush1.bf16.msra.mxu0 %v2224
    %2529 = vmatprep.subr.bf16.mxu0 %v2229
    %2530 = vmatpush1.bf16.msra.mxu0 %v2228
    %2531 = vmatprep.subr.bf16.mxu0 %v2233
    %2532 = vmatpush1.bf16.msra.mxu0 %v2232
    %2533 = vmatprep.subr.bf16.mxu0 %v2237
    %2534 = vmatpush1.bf16.msra.mxu0 %v2236
    %2535 = vmatprep.subr.bf16.mxu0 %v2241
    %2536 = vmatpush1.bf16.msra.mxu0 %v2240
    %2537 = vmatprep.subr.bf16.mxu0 %v2245
    %2538 = vmatpush1.bf16.msra.mxu0 %v2244
    %2539 = vmatprep.subr.bf16.mxu0 %v2249
    %2540 = vmatpush1.bf16.msra.mxu0 %v2248
    %2541 = vmatprep.subr.bf16.mxu0 %v2253
    %2542 = vmatpush1.bf16.msra.mxu0 %v2252
    %2543 = vmatprep.mubr.bf16.mxu0 %v1577
    %2544 = vmatmul.mubr.bf16.gmra.mrb[0].mxu0 %v1576
    %v2545 = vpop.f32.mrb[0].mxu0
    %v2546 = vadd.f32 %v2503, %v2545
    %v2547 = vpop.f32.mrb[0].mxu0
    %v2548 = vadd.f32 %v2505, %v2547
    %v2549 = vpop.f32.mrb[0].mxu0
    %v2550 = vadd.f32 %v2507, %v2549
    %v2551 = vpop.f32.mrb[0].mxu0
    %v2552 = vadd.f32 %v2509, %v2551
    %2553 = vdwg.mxu0
    %v2554 = vmul.f32 %v2460, 0.2
    %v2555 = vmul.f32 %v2462, 0.2
    %v2556 = vmul.f32 %v2546, 0.2
    %v2557 = vmul.f32 %v2548, 0.2
    %v2558 = vmul.f32 %v2464, 0.2
    %v2559 = vmul.f32 %v2466, 0.2
    %v2560 = vmul.f32 %v2550, 0.2
    %v2561 = vmul.f32 %v2552, 0.2
    %v2562 = vmax.f32 %v2460, %v2554
    %v2563 = vmax.f32 %v2462, %v2555
    %v2564 = vmax.f32 %v2546, %v2556
    %v2565 = vmax.f32 %v2548, %v2557
    %v2566 = vmax.f32 %v2464, %v2558
    %v2567 = vmax.f32 %v2466, %v2559
    %v2568 = vmax.f32 %v2550, %v2560
    %v2569 = vmax.f32 %v2552, %v2561
    %v2570 = vpack.c.bf16 %v2566, %v2562
    %v2571 = vpack.c.bf16 %v2567, %v2563
    %v2572 = vpack.c.bf16 %v2568, %v2564
    %v2573 = vpack.c.bf16 %v2569, %v2565
    %v2574 = vld [vmem:[#allocation6] sm:$0xf]
    %v2575 = vld [vmem:[#allocation6 + $0x4] sm:$0xf]
    %v2576 = vld [vmem:[#allocation6 + $0x8] sm:$0xf]
    %v2577 = vld [vmem:[#allocation6 + $0xc] sm:$0xf]
    %v2578 = vld [vmem:[#allocation6 + $0x10] sm:$0xf]
    %v2579 = vld [vmem:[#allocation6 + $0x14] sm:$0xf]
    %v2580 = vld [vmem:[#allocation6 + $0x18] sm:$0xf]
    %v2581 = vld [vmem:[#allocation6 + $0x1c] sm:$0xf]
    %v2582 = vld [vmem:[#allocation6 + $0x20] sm:$0xf]
    %v2583 = vld [vmem:[#allocation6 + $0x24] sm:$0xf]
    %v2584 = vld [vmem:[#allocation6 + $0x28] sm:$0xf]
    %v2585 = vld [vmem:[#allocation6 + $0x2c] sm:$0xf]
    %v2586 = vld [vmem:[#allocation6 + $0x30] sm:$0xf]
    %v2587 = vld [vmem:[#allocation6 + $0x34] sm:$0xf]
    %v2588 = vld [vmem:[#allocation6 + $0x38] sm:$0xf]
    %v2589 = vld [vmem:[#allocation6 + $0x3c] sm:$0xf]
    %v2590 = vld [vmem:[#allocation6 + $0x40] sm:$0xf]
    %v2591 = vld [vmem:[#allocation6 + $0x44] sm:$0xf]
    %v2592 = vld [vmem:[#allocation6 + $0x48] sm:$0xf]
    %v2593 = vld [vmem:[#allocation6 + $0x4c] sm:$0xf]
    %v2594 = vld [vmem:[#allocation6 + $0x50] sm:$0xf]
    %v2595 = vld [vmem:[#allocation6 + $0x54] sm:$0xf]
    %v2596 = vld [vmem:[#allocation6 + $0x58] sm:$0xf]
    %v2597 = vld [vmem:[#allocation6 + $0x5c] sm:$0xf]
    %v2598 = vld [vmem:[#allocation6 + $0x60] sm:$0xf]
    %v2599 = vld [vmem:[#allocation6 + $0x64] sm:$0xf]
    %v2600 = vld [vmem:[#allocation6 + $0x68] sm:$0xf]
    %v2601 = vld [vmem:[#allocation6 + $0x6c] sm:$0xf]
    %v2602 = vld [vmem:[#allocation6 + $0x70] sm:$0xf]
    %v2603 = vld [vmem:[#allocation6 + $0x74] sm:$0xf]
    %v2604 = vld [vmem:[#allocation6 + $0x78] sm:$0xf]
    %v2605 = vld [vmem:[#allocation6 + $0x7c] sm:$0xf]
    %v2606 = vld [vmem:[#allocation6 + $0x80] sm:$0xf]
    %v2607 = vld [vmem:[#allocation6 + $0x84] sm:$0xf]
    %v2608 = vld [vmem:[#allocation6 + $0x88] sm:$0xf]
    %v2609 = vld [vmem:[#allocation6 + $0x8c] sm:$0xf]
    %v2610 = vld [vmem:[#allocation6 + $0x90] sm:$0xf]
    %v2611 = vld [vmem:[#allocation6 + $0x94] sm:$0xf]
    %v2612 = vld [vmem:[#allocation6 + $0x98] sm:$0xf]
    %v2613 = vld [vmem:[#allocation6 + $0x9c] sm:$0xf]
    %v2614 = vld [vmem:[#allocation6 + $0xa0] sm:$0xf]
    %v2615 = vld [vmem:[#allocation6 + $0xa4] sm:$0xf]
    %v2616 = vld [vmem:[#allocation6 + $0xa8] sm:$0xf]
    %v2617 = vld [vmem:[#allocation6 + $0xac] sm:$0xf]
    %v2618 = vld [vmem:[#allocation6 + $0xb0] sm:$0xf]
    %v2619 = vld [vmem:[#allocation6 + $0xb4] sm:$0xf]
    %v2620 = vld [vmem:[#allocation6 + $0xb8] sm:$0xf]
    %v2621 = vld [vmem:[#allocation6 + $0xbc] sm:$0xf]
    %v2622 = vld [vmem:[#allocation6 + $0xc0] sm:$0xf]
    %v2623 = vld [vmem:[#allocation6 + $0xc4] sm:$0xf]
    %v2624 = vld [vmem:[#allocation6 + $0xc8] sm:$0xf]
    %v2625 = vld [vmem:[#allocation6 + $0xcc] sm:$0xf]
    %v2626 = vld [vmem:[#allocation6 + $0xd0] sm:$0xf]
    %v2627 = vld [vmem:[#allocation6 + $0xd4] sm:$0xf]
    %v2628 = vld [vmem:[#allocation6 + $0xd8] sm:$0xf]
    %v2629 = vld [vmem:[#allocation6 + $0xdc] sm:$0xf]
    %v2630 = vld [vmem:[#allocation6 + $0xe0] sm:$0xf]
    %v2631 = vld [vmem:[#allocation6 + $0xe4] sm:$0xf]
    %v2632 = vld [vmem:[#allocation6 + $0xe8] sm:$0xf]
    %v2633 = vld [vmem:[#allocation6 + $0xec] sm:$0xf]
    %v2634 = vld [vmem:[#allocation6 + $0xf0] sm:$0xf]
    %v2635 = vld [vmem:[#allocation6 + $0xf4] sm:$0xf]
    %v2636 = vld [vmem:[#allocation6 + $0xf8] sm:$0xf]
    %v2637 = vld [vmem:[#allocation6 + $0xfc] sm:$0xf]
    %v2638 = vlaneseq
    %v2639 = vshrl.u32 %v2638, 7
    %v2640 = vsub.s32 2, %v2639
    %v2641 = vrot.slane %v68, %v2640
    %v2706 = vunpack.c.l.b16 %v2574
    %v2707 = vunpack.c.l.b16 %v2575
    %v2708 = vunpack.c.l.b16 %v2576
    %v2709 = vunpack.c.l.b16 %v2577
    %v2710 = vunpack.c.l.b16 %v2578
    %v2711 = vunpack.c.l.b16 %v2579
    %v2712 = vunpack.c.l.b16 %v2580
    %v2713 = vunpack.c.l.b16 %v2581
    %v2714 = vunpack.c.l.b16 %v2582
    %v2715 = vunpack.c.l.b16 %v2583
    %v2716 = vunpack.c.l.b16 %v2584
    %v2717 = vunpack.c.l.b16 %v2585
    %v2718 = vunpack.c.l.b16 %v2586
    %v2719 = vunpack.c.l.b16 %v2587
    %v2720 = vunpack.c.l.b16 %v2588
    %v2721 = vunpack.c.l.b16 %v2589
    %v2722 = vunpack.c.l.b16 %v2590
    %v2723 = vunpack.c.l.b16 %v2591
    %v2724 = vunpack.c.l.b16 %v2592
    %v2725 = vunpack.c.l.b16 %v2593
    %v2726 = vunpack.c.l.b16 %v2594
    %v2727 = vunpack.c.l.b16 %v2595
    %v2728 = vunpack.c.l.b16 %v2596
    %v2729 = vunpack.c.l.b16 %v2597
    %v2730 = vunpack.c.l.b16 %v2598
    %v2731 = vunpack.c.l.b16 %v2599
    %v2732 = vunpack.c.l.b16 %v2600
    %v2733 = vunpack.c.l.b16 %v2601
    %v2734 = vunpack.c.l.b16 %v2602
    %v2735 = vunpack.c.l.b16 %v2603
    %v2736 = vunpack.c.l.b16 %v2604
    %v2737 = vunpack.c.l.b16 %v2605
    %v2738 = vunpack.c.l.b16 %v2606
    %v2739 = vunpack.c.l.b16 %v2607
    %v2740 = vunpack.c.l.b16 %v2608
    %v2741 = vunpack.c.l.b16 %v2609
    %v2742 = vunpack.c.l.b16 %v2610
    %v2743 = vunpack.c.l.b16 %v2611
    %v2744 = vunpack.c.l.b16 %v2612
    %v2745 = vunpack.c.l.b16 %v2613
    %v2746 = vunpack.c.l.b16 %v2614
    %v2747 = vunpack.c.l.b16 %v2615
    %v2748 = vunpack.c.l.b16 %v2616
    %v2749 = vunpack.c.l.b16 %v2617
    %v2750 = vunpack.c.l.b16 %v2618
    %v2751 = vunpack.c.l.b16 %v2619
    %v2752 = vunpack.c.l.b16 %v2620
    %v2753 = vunpack.c.l.b16 %v2621
    %v2754 = vunpack.c.l.b16 %v2622
    %v2755 = vunpack.c.l.b16 %v2623
    %v2756 = vunpack.c.l.b16 %v2624
    %v2757 = vunpack.c.l.b16 %v2625
    %v2758 = vunpack.c.l.b16 %v2626
    %v2759 = vunpack.c.l.b16 %v2627
    %v2760 = vunpack.c.l.b16 %v2628
    %v2761 = vunpack.c.l.b16 %v2629
    %v2762 = vunpack.c.l.b16 %v2630
    %v2763 = vunpack.c.l.b16 %v2631
    %v2764 = vunpack.c.l.b16 %v2632
    %v2765 = vunpack.c.l.b16 %v2633
    %v2766 = vunpack.c.l.b16 %v2634
    %v2767 = vunpack.c.l.b16 %v2635
    %v2768 = vunpack.c.l.b16 %v2636
    %v2769 = vunpack.c.l.b16 %v2637
    %v2770 = vpack.c.b16 %v2707, %v2706
    %v2771 = vpack.c.b16 %v2709, %v2708
    %v2772 = vpack.c.b16 %v2711, %v2710
    %v2773 = vpack.c.b16 %v2713, %v2712
    %v2774 = vpack.c.b16 %v2715, %v2714
    %v2775 = vpack.c.b16 %v2717, %v2716
    %v2776 = vpack.c.b16 %v2719, %v2718
    %v2777 = vpack.c.b16 %v2721, %v2720
    %v2778 = vpack.c.b16 %v2723, %v2722
    %v2779 = vpack.c.b16 %v2725, %v2724
    %v2780 = vpack.c.b16 %v2727, %v2726
    %v2781 = vpack.c.b16 %v2729, %v2728
    %v2782 = vpack.c.b16 %v2731, %v2730
    %v2783 = vpack.c.b16 %v2733, %v2732
    %v2784 = vpack.c.b16 %v2735, %v2734
    %v2785 = vpack.c.b16 %v2737, %v2736
    %v2786 = vpack.c.b16 %v2739, %v2738
    %v2787 = vpack.c.b16 %v2741, %v2740
    %v2788 = vpack.c.b16 %v2743, %v2742
    %v2789 = vpack.c.b16 %v2745, %v2744
    %v2790 = vpack.c.b16 %v2747, %v2746
    %v2791 = vpack.c.b16 %v2749, %v2748
    %v2792 = vpack.c.b16 %v2751, %v2750
    %v2793 = vpack.c.b16 %v2753, %v2752
    %v2794 = vpack.c.b16 %v2755, %v2754
    %v2795 = vpack.c.b16 %v2757, %v2756
    %v2796 = vpack.c.b16 %v2759, %v2758
    %v2797 = vpack.c.b16 %v2761, %v2760
    %v2798 = vpack.c.b16 %v2763, %v2762
    %v2799 = vpack.c.b16 %v2765, %v2764
    %v2800 = vpack.c.b16 %v2767, %v2766
    %v2801 = vpack.c.b16 %v2769, %v2768
    %2834 = vmatprep.subr.bf16.mxu0 0
    %2835 = vmatpush1.bf16.msra.mxu0 %v2770
    %2836 = vmatprep.subr.bf16.mxu0 0
    %2837 = vmatpush1.bf16.msra.mxu0 %v2771
    %2838 = vmatprep.subr.bf16.mxu0 0
    %2839 = vmatpush1.bf16.msra.mxu0 %v2772
    %2840 = vmatprep.subr.bf16.mxu0 0
    %2841 = vmatpush1.bf16.msra.mxu0 %v2773
    %2842 = vmatprep.subr.bf16.mxu0 0
    %2843 = vmatpush1.bf16.msra.mxu0 %v2774
    %2844 = vmatprep.subr.bf16.mxu0 0
    %2845 = vmatpush1.bf16.msra.mxu0 %v2775
    %2846 = vmatprep.subr.bf16.mxu0 0
    %2847 = vmatpush1.bf16.msra.mxu0 %v2776
    %2848 = vmatprep.subr.bf16.mxu0 0
    %2849 = vmatpush1.bf16.msra.mxu0 %v2777
    %2850 = vmatprep.subr.bf16.mxu0 0
    %2851 = vmatpush1.bf16.msra.mxu0 %v2778
    %2852 = vmatprep.subr.bf16.mxu0 0
    %2853 = vmatpush1.bf16.msra.mxu0 %v2779
    %2854 = vmatprep.subr.bf16.mxu0 0
    %2855 = vmatpush1.bf16.msra.mxu0 %v2780
    %2856 = vmatprep.subr.bf16.mxu0 0
    %2857 = vmatpush1.bf16.msra.mxu0 %v2781
    %2858 = vmatprep.subr.bf16.mxu0 0
    %2859 = vmatpush1.bf16.msra.mxu0 %v2782
    %2860 = vmatprep.subr.bf16.mxu0 0
    %2861 = vmatpush1.bf16.msra.mxu0 %v2783
    %2862 = vmatprep.subr.bf16.mxu0 0
    %2863 = vmatpush1.bf16.msra.mxu0 %v2784
    %2864 = vmatprep.subr.bf16.mxu0 0
    %2865 = vmatpush1.bf16.msra.mxu0 %v2785
    %2866 = vmatprep.mubr.bf16.mxu0 %v2571
    %2867 = vmatmul.mubr.bf16.gmra.mrb[0].mxu0 %v2570
    %v2868 = vpop.f32.mrb[0].mxu0
    %v2869 = vadd.f32 %v2641, %v2868
    %v2870 = vpop.f32.mrb[0].mxu0
    %v2871 = vpop.f32.mrb[0].mxu0
    %v2872 = vadd.f32 %v2641, %v2871
    %v2873 = vpop.f32.mrb[0].mxu0
    %2874 = vdwg.mxu0
    %2875 = vmatprep.subr.bf16.mxu0 0
    %2876 = vmatpush1.bf16.msra.mxu0 %v2786
    %2877 = vmatprep.subr.bf16.mxu0 0
    %2878 = vmatpush1.bf16.msra.mxu0 %v2787
    %2879 = vmatprep.subr.bf16.mxu0 0
    %2880 = vmatpush1.bf16.msra.mxu0 %v2788
    %2881 = vmatprep.subr.bf16.mxu0 0
    %2882 = vmatpush1.bf16.msra.mxu0 %v2789
    %2883 = vmatprep.subr.bf16.mxu0 0
    %2884 = vmatpush1.bf16.msra.mxu0 %v2790
    %2885 = vmatprep.subr.bf16.mxu0 0
    %2886 = vmatpush1.bf16.msra.mxu0 %v2791
    %2887 = vmatprep.subr.bf16.mxu0 0
    %2888 = vmatpush1.bf16.msra.mxu0 %v2792
    %2889 = vmatprep.subr.bf16.mxu0 0
    %2890 = vmatpush1.bf16.msra.mxu0 %v2793
    %2891 = vmatprep.subr.bf16.mxu0 0
    %2892 = vmatpush1.bf16.msra.mxu0 %v2794
    %2893 = vmatprep.subr.bf16.mxu0 0
    %2894 = vmatpush1.bf16.msra.mxu0 %v2795
    %2895 = vmatprep.subr.bf16.mxu0 0
    %2896 = vmatpush1.bf16.msra.mxu0 %v2796
    %2897 = vmatprep.subr.bf16.mxu0 0
    %2898 = vmatpush1.bf16.msra.mxu0 %v2797
    %2899 = vmatprep.subr.bf16.mxu0 0
    %2900 = vmatpush1.bf16.msra.mxu0 %v2798
    %2901 = vmatprep.subr.bf16.mxu0 0
    %2902 = vmatpush1.bf16.msra.mxu0 %v2799
    %2903 = vmatprep.subr.bf16.mxu0 0
    %2904 = vmatpush1.bf16.msra.mxu0 %v2800
    %2905 = vmatprep.subr.bf16.mxu0 0
    %2906 = vmatpush1.bf16.msra.mxu0 %v2801
    %2907 = vmatprep.mubr.bf16.mxu0 %v2573
    %2908 = vmatmul.mubr.bf16.gmra.mrb[0].mxu0 %v2572
    %v2909 = vpop.f32.mrb[0].mxu0
    %v2910 = vadd.f32 %v2869, %v2909
    %v2911 = vpop.f32.mrb[0].mxu0
    %v2912 = vpop.f32.mrb[0].mxu0
    %v2913 = vadd.f32 %v2872, %v2912
    %v2914 = vpop.f32.mrb[0].mxu0
    %2915 = vdwg.mxu0
    %2916 = vst [vmem:[%s7] sm:$0xff] %v2910
    %2917 = vst [vmem:[%s7 + $0x8] sm:$0xff] %v2913
    // Predicated region
    $region42: #{_disc_forward.1} parent=1 // pred_check
      _
    $region43: #{_disc_forward.1} parent=1 // pred_check_branch
      %2919 = sbr.rel (0) target = $region45
    $region44: #{_disc_forward.1} parent=1 // pred_region
      _
    $region45: #{_disc_forward.1} parent=1 // pred_fallthru
      _
    // Predicated region
    $region46: #{_disc_forward.1} parent=1 // pred_check
      _
    $region47: #{_disc_forward.1} parent=1 // pred_check_branch
      %2921 = sbr.rel (0) target = $region49
    $region48: #{_disc_forward.1} parent=1 // pred_region
      _
    $region49: #{_disc_forward.1} parent=1 // pred_fallthru
      _
    %2922 = vsyncpa [#allocation3], 1
    %2923 = vsyncpa [#allocation5], 1

</llo_original>
